<compile_context>
chip_gen: v7x
topology: tpu7x:2x2x1
jax: 0.10.0
libtpu: 0.0.40
codegen_flags: <defaults>
</compile_context>

<pallas_src>
import jax
import jax.numpy as jnp
from jax.experimental import pallas as pl
from jax.experimental.pallas import tpu as pltpu


def _round_up(x, m):
    return ((x + m - 1) // m) * m


def _choose_tile_b(batch, bytes_per_row):
    """Batch tile: multiple of 128 (lane-dense output), footprint-budgeted so
    double-buffered inputs + in-kernel activations stay well inside v7x's
    64 MiB VMEM, and >= 2 tiles for large batches so the 'parallel' grid axis
    shards across v7x's two TensorCores."""
    budget = 12 * 1024 * 1024                          # per-tile activation budget
    cap = budget // max(int(bytes_per_row), 1)
    cap = max(128, (cap // 128) * 128)
    cap = min(cap, 4096)
    if batch > 256:
        two_way = _round_up(-(-batch // 2), 128)       # ensure >= 2 tiles (v7x 2 TCs)
        return min(cap, two_way)
    return min(cap, _round_up(max(batch, 1), 128))


def _critics_mlp_kernel(feat_ref, act_ref, w1f_ref, w1a_ref, b1_ref,
                        w2_ref, b2_ref, w3_ref, b3_ref, o_ref):
    """All critics in one body.

    feat: (tile_b, d_feat), act: (tile_b, a_dim) -> o: (n_critics, tile_b).
    Layer 1 is fused across critics (N = n_critics*H1p) and split over the
    feat/act operands so the concatenated input never exists in HBM.
    """
    n_critics, h1p, _ = w2_ref.shape

    feat = feat_ref[...]                               # (tile_b, d_feat) f32
    act = act_ref[...]                                 # (tile_b, a_dim)  f32
    h1_all = (jnp.dot(feat, w1f_ref[...], preferred_element_type=jnp.float32)
              + jnp.dot(act, w1a_ref[...], preferred_element_type=jnp.float32)
              + b1_ref[...])
    h1_all = jnp.maximum(h1_all, 0.0)                  # (tile_b, n_critics*H1p)

    qs = []
    for c in range(n_critics):                         # static unroll (n_critics small)
        h1 = h1_all[:, c * h1p:(c + 1) * h1p]          # 128-aligned lane slice
        h2 = jnp.dot(h1, w2_ref[c], preferred_element_type=jnp.float32) + b2_ref[c]
        h2 = jnp.maximum(h2, 0.0)                      # (tile_b, H2p)
        # Final Linear(H2 -> 1) as a lane reduction (VPU/XLU) instead of an
        # N=1 MXU matmul; b3 is an SMEM scalar.
        qs.append(jnp.sum(h2 * w3_ref[c], axis=-1) + b3_ref[c])      # (tile_b,)
    o_ref[...] = jnp.stack(qs, axis=0).astype(o_ref.dtype)           # (n_critics, tile_b)


def continuous_critic_forward(obs, actions, params):
    """
    obs:     (B, C, H, W) float32 (already 'preprocessed' non-image obs -> no /255)
    actions: (B, A)       float32
    params:  stacked critic weights:
       w1 (n_critics, D_in, H1), b1 (n_critics, 1, H1)
       w2 (n_critics, H1,  H2),  b2 (n_critics, 1, H2)
       w3 (n_critics, H2,  1),   b3 (n_critics, 1, 1)
    Returns tuple of n_critics arrays of shape (B, 1).
    """
    B = obs.shape[0]
    features = obs.reshape(B, -1).astype(jnp.float32)  # nn.Flatten() (free reshape)
    actions = actions.astype(jnp.float32)
    d_feat = features.shape[1]
    a_dim = actions.shape[1]

    w1, b1 = params["w1"], params["b1"]
    w2, b2 = params["w2"], params["b2"]
    w3, b3 = params["w3"], params["b3"]
    n_critics = w1.shape[0]
    assert w1.shape[1] == d_feat + a_dim
    h1, h2 = w1.shape[2], w2.shape[2]

    # --- parameter packing (weights are tiny; done once per call here, would be
    #     done once offline in a real training loop) ---
    # Zero-pad hidden dims to full 128-lane vregs / MXU tiles. Exact because
    # ReLU(0) = 0 and the padded w2/w3 rows are zero.
    h1p = _round_up(h1, 128)
    h2p = _round_up(h2, 128)
    w1p = jnp.pad(w1, ((0, 0), (0, 0), (0, h1p - h1)))             # (C, d_in, H1p)
    # Fuse layer 1 across critics along the output dim, split along (feat, act).
    w1f = jnp.transpose(w1p[:, :d_feat, :], (1, 0, 2)).reshape(d_feat, n_critics * h1p)
    w1a = jnp.transpose(w1p[:, d_feat:, :], (1, 0, 2)).reshape(a_dim, n_critics * h1p)
    b1_all = jnp.pad(b1, ((0, 0), (0, 0), (0, h1p - h1))).reshape(1, n_critics * h1p)
    w2p = jnp.pad(w2, ((0, 0), (0, h1p - h1), (0, h2p - h2)))      # (C, H1p, H2p)
    b2p = jnp.pad(b2, ((0, 0), (0, 0), (0, h2p - h2)))             # (C, 1, H2p)
    # Final layer as a broadcast row for the in-kernel lane reduction.
    w3row = jnp.pad(jnp.transpose(w3, (0, 2, 1)), ((0, 0), (0, 0), (0, h2p - h2)))
    b3s = b3.reshape(n_critics).astype(jnp.float32)                # SMEM scalars

    # --- batch tiling (parallel grid axis) ---
    bytes_per_row = 4 * (2 * (d_feat + a_dim + n_critics)          # dbl-buffered in/out
                         + 2 * (n_critics * h1p + h2p))            # activations + slack
    tile_b = _choose_tile_b(B, bytes_per_row)
    num_b_tiles = -(-B // tile_b)
    b_pad = num_b_tiles * tile_b
    # No batch padding: the partial last block reads past row B-1 (undefined
    # values), but rows are independent so garbage only lands in output
    # columns >= B, which are sliced off below.

    out = pl.pallas_call(
        _critics_mlp_kernel,
        out_shape=jax.ShapeDtypeStruct((n_critics, b_pad), jnp.float32),
        grid_spec=pltpu.PrefetchScalarGridSpec(
            num_scalar_prefetch=0,
            grid=(num_b_tiles,),
            in_specs=[
                # batch-tiled inputs (no concatenated copy in HBM)
                pl.BlockSpec((tile_b, d_feat), lambda i: (i, 0)),
                pl.BlockSpec((tile_b, a_dim), lambda i: (i, 0)),
                # packed weights: constant index_map -> resident across batch tiles
                pl.BlockSpec((d_feat, n_critics * h1p), lambda i: (0, 0)),
                pl.BlockSpec((a_dim, n_critics * h1p), lambda i: (0, 0)),
                pl.BlockSpec((1, n_critics * h1p), lambda i: (0, 0)),
                pl.BlockSpec((n_critics, h1p, h2p), lambda i: (0, 0, 0)),
                pl.BlockSpec((n_critics, 1, h2p), lambda i: (0, 0, 0)),
                pl.BlockSpec((n_critics, 1, h2p), lambda i: (0, 0, 0)),
                # b3 scalars in SMEM
                pl.BlockSpec(memory_space=pltpu.MemorySpace.SMEM),
            ],
            # lane-dense output: (n_critics, tile_b) blocks, tile_b % 128 == 0
            out_specs=pl.BlockSpec((n_critics, tile_b), lambda i: (0, i)),
        ),
        compiler_params=pltpu.CompilerParams(
            dimension_semantics=("parallel",),
            vmem_limit_bytes=48 * 1024 * 1024),
    )(features, actions, w1f, w1a, b1_all, w2p, b2p, w3row, b3s)

    out = out[:, :B]                                   # drop padded batch columns
    return tuple(out[c].reshape(B, 1) for c in range(n_critics))


def _reference_forward(obs, actions, params):
    """Pure-JAX reference for correctness checking."""
    B = obs.shape[0]
    x = jnp.concatenate([obs.reshape(B, -1), actions], axis=1)
    outs = []
    for c in range(params["w1"].shape[0]):
        h = jnp.maximum(x @ params["w1"][c] + params["b1"][c], 0.0)
        h = jnp.maximum(h @ params["w2"][c] + params["b2"][c], 0.0)
        outs.append(h @ params["w3"][c] + params["b3"][c])
    return tuple(outs)


def init_params(key, n_critics, d_in, net_arch):
    """Deterministic synthetic init (Kaiming-uniform-ish scaling, like nn.Linear)."""
    h1, h2 = net_arch
    ks = jax.random.split(key, 3)

    def lin(kw, fan_in, fan_out):
        bound = 1.0 / jnp.sqrt(fan_in)
        w = jax.random.uniform(kw, (n_critics, fan_in, fan_out),
                               minval=-bound, maxval=bound, dtype=jnp.float32)
        kb = jax.random.fold_in(kw, 1)
        b = jax.random.uniform(kb, (n_critics, 1, fan_out),
                               minval=-bound, maxval=bound, dtype=jnp.float32)
        return w, b

    w1, b1 = lin(ks[0], d_in, h1)
    w2, b2 = lin(ks[1], h1, h2)
    w3, b3 = lin(ks[2], h2, 1)
    return dict(w1=w1, b1=b1, w2=w2, b2=b2, w3=w3, b3=b3)


def _check(obs, actions, params):
    qs = continuous_critic_forward(obs, actions, params)
    qs = jax.block_until_ready(qs)
    refs = _reference_forward(obs, actions, params)
    B = obs.shape[0]
    for q, r in zip(qs, refs):
        assert q.shape == (B, 1)
        assert jnp.allclose(q, r, atol=1e-5, rtol=1e-5)


if __name__ == "__main__":
    # Small shapes consistent with the module:
    #   obs: (B=2, C=4, H=4, W=2) -> features_dim = 32 after Flatten
    #   actions: (B=2, A=4); net_arch = [64, 64]; n_critics = 2
    B, C, H, W = 2, 4, 4, 2
    A = 4
    net_arch = [64, 64]
    n_critics = 2
    d_in = C * H * W + A

    key = jax.random.PRNGKey(0)
    k_obs, k_act, k_par, k_obs2, k_act2 = jax.random.split(key, 5)
    params = init_params(k_par, n_critics, d_in, net_arch)

    obs = jax.random.normal(k_obs, (B, C, H, W), dtype=jnp.float32)
    actions = jax.random.uniform(k_act, (B, A), minval=-1.0, maxval=1.0,
                                 dtype=jnp.float32)
    _check(obs, actions, params)

    # Extra check exercising the multi-tile grid path (2 tiles + partial last block).
    B2 = 600
    obs2 = jax.random.normal(k_obs2, (B2, C, H, W), dtype=jnp.float32)
    actions2 = jax.random.uniform(k_act2, (B2, A), minval=-1.0, maxval=1.0,
                                  dtype=jnp.float32)
    _check(obs2, actions2, params)

    print("KERNEL_OK")
</pallas_src>

<mosaic_0001>
module attributes {stable_mosaic.version = 11 : i64} {
  func.func @_critics_mlp_kernel(%arg0: i32, %arg1: memref<128x32xf32, #tpu.memory_space<vmem>>, %arg2: memref<128x4xf32, #tpu.memory_space<vmem>>, %arg3: memref<32x256xf32, #tpu.memory_space<vmem>>, %arg4: memref<4x256xf32, #tpu.memory_space<vmem>>, %arg5: memref<1x256xf32, #tpu.memory_space<vmem>>, %arg6: memref<2x128x128xf32, #tpu.memory_space<vmem>>, %arg7: memref<2x1x128xf32, #tpu.memory_space<vmem>>, %arg8: memref<2x1x128xf32, #tpu.memory_space<vmem>>, %arg9: memref<2xf32, #tpu.memory_space<smem>>, %arg10: memref<2x128xf32, #tpu.memory_space<vmem>>) attributes {dimension_semantics = [#tpu.dimension_semantics<parallel>], iteration_bounds = array<i64: 1>, scalar_prefetch = 0 : i64, scratch_operands = 0 : i64, tpu.core_type = #tpu.core_type<tc>, window_params = [{transform_indices = @transform_0, window_bounds = array<i64: 128, 32>}, {transform_indices = @transform_1, window_bounds = array<i64: 128, 4>}, {pipeline_mode = #tpu.pipeline_mode<synchronous>, transform_indices = @transform_2, window_bounds = array<i64: 32, 256>}, {pipeline_mode = #tpu.pipeline_mode<synchronous>, transform_indices = @transform_3, window_bounds = array<i64: 4, 256>}, {pipeline_mode = #tpu.pipeline_mode<synchronous>, transform_indices = @transform_4, window_bounds = array<i64: 1, 256>}, {pipeline_mode = #tpu.pipeline_mode<synchronous>, transform_indices = @transform_5, window_bounds = array<i64: 2, 128, 128>}, {pipeline_mode = #tpu.pipeline_mode<synchronous>, transform_indices = @transform_6, window_bounds = array<i64: 2, 1, 128>}, {pipeline_mode = #tpu.pipeline_mode<synchronous>, transform_indices = @transform_7, window_bounds = array<i64: 2, 1, 128>}, {transform_indices = @transform_8, window_bounds = array<i64: 2>}, {transform_indices = @transform_9, window_bounds = array<i64: 2, 128>}]} {
    %c0 = arith.constant 0 : index
    %c0_0 = arith.constant 0 : index
    %0 = vector.load %arg1[%c0, %c0_0] : memref<128x32xf32, #tpu.memory_space<vmem>>, vector<128x32xf32>
    %c0_1 = arith.constant 0 : index
    %c0_2 = arith.constant 0 : index
    %1 = vector.load %arg2[%c0_1, %c0_2] : memref<128x4xf32, #tpu.memory_space<vmem>>, vector<128x4xf32>
    %c0_3 = arith.constant 0 : index
    %c0_4 = arith.constant 0 : index
    %2 = vector.load %arg3[%c0_3, %c0_4] : memref<32x256xf32, #tpu.memory_space<vmem>>, vector<32x256xf32>
    %cst = arith.constant dense<0.000000e+00> : vector<128x256xf32>
    %3 = tpu.matmul %0, %2, %cst {dimension_numbers = #tpu.dot_dimension_numbers<[1], [0], [0], [1], [0, 0, 1, 1], [], []>} : vector<128x32xf32>, vector<32x256xf32>, vector<128x256xf32> -> vector<128x256xf32>
    %c0_5 = arith.constant 0 : index
    %c0_6 = arith.constant 0 : index
    %4 = vector.load %arg4[%c0_5, %c0_6] : memref<4x256xf32, #tpu.memory_space<vmem>>, vector<4x256xf32>
    %cst_7 = arith.constant dense<0.000000e+00> : vector<128x256xf32>
    %5 = tpu.matmul %1, %4, %cst_7 {dimension_numbers = #tpu.dot_dimension_numbers<[1], [0], [0], [1], [0, 0, 1, 1], [], []>} : vector<128x4xf32>, vector<4x256xf32>, vector<128x256xf32> -> vector<128x256xf32>
    %6 = arith.addf %3, %5 : vector<128x256xf32>
    %c0_8 = arith.constant 0 : index
    %c0_9 = arith.constant 0 : index
    %7 = vector.load %arg5[%c0_8, %c0_9] : memref<1x256xf32, #tpu.memory_space<vmem>>, vector<1x256xf32>
    %8 = vector.broadcast %7 : vector<1x256xf32> to vector<128x256xf32>
    %9 = arith.addf %6, %8 : vector<128x256xf32>
    %cst_10 = arith.constant 0.000000e+00 : f32
    %10 = vector.broadcast %cst_10 : f32 to vector<128x256xf32>
    %11 = arith.maximumf %9, %10 : vector<128x256xf32>
    %12 = vector.extract_strided_slice %11 {offsets = [0, 0], sizes = [128, 128], strides = [1, 1]} : vector<128x256xf32> to vector<128x128xf32>
    %c0_11 = arith.constant 0 : index
    %c0_12 = arith.constant 0 : index
    %c0_13 = arith.constant 0 : index
    %13 = vector.load %arg6[%c0_11, %c0_12, %c0_13] : memref<2x128x128xf32, #tpu.memory_space<vmem>>, vector<1x128x128xf32>
    %14 = vector.shape_cast %13 : vector<1x128x128xf32> to vector<128x128xf32>
    %cst_14 = arith.constant dense<0.000000e+00> : vector<128x128xf32>
    %15 = tpu.matmul %12, %14, %cst_14 {dimension_numbers = #tpu.dot_dimension_numbers<[1], [0], [0], [1], [0, 0, 1, 1], [], []>} : vector<128x128xf32>, vector<128x128xf32>, vector<128x128xf32> -> vector<128x128xf32>
    %c0_15 = arith.constant 0 : index
    %c0_16 = arith.constant 0 : index
    %c0_17 = arith.constant 0 : index
    %16 = vector.load %arg7[%c0_15, %c0_16, %c0_17] : memref<2x1x128xf32, #tpu.memory_space<vmem>>, vector<1x1x128xf32>
    %17 = vector.shape_cast %16 : vector<1x1x128xf32> to vector<1x128xf32>
    %18 = vector.broadcast %17 : vector<1x128xf32> to vector<128x128xf32>
    %19 = arith.addf %15, %18 : vector<128x128xf32>
    %cst_18 = arith.constant 0.000000e+00 : f32
    %20 = vector.broadcast %cst_18 : f32 to vector<128x128xf32>
    %21 = arith.maximumf %19, %20 : vector<128x128xf32>
    %c0_19 = arith.constant 0 : index
    %c0_20 = arith.constant 0 : index
    %c0_21 = arith.constant 0 : index
    %22 = vector.load %arg8[%c0_19, %c0_20, %c0_21] : memref<2x1x128xf32, #tpu.memory_space<vmem>>, vector<1x1x128xf32>
    %23 = vector.shape_cast %22 : vector<1x1x128xf32> to vector<1x128xf32>
    %24 = vector.broadcast %23 : vector<1x128xf32> to vector<128x128xf32>
    %25 = arith.mulf %21, %24 : vector<128x128xf32>
    %cst_22 = arith.constant dense<0.000000e+00> : vector<128xf32>
    %26 = vector.multi_reduction <add>, %25, %cst_22 [1] : vector<128x128xf32> to vector<128xf32>
    %c0_23 = arith.constant 0 : index
    %27 = memref.load %arg9[%c0_23] : memref<2xf32, #tpu.memory_space<smem>>
    %28 = vector.broadcast %27 : f32 to vector<128xf32>
    %29 = arith.addf %26, %28 : vector<128xf32>
    %30 = vector.extract_strided_slice %11 {offsets = [0, 128], sizes = [128, 128], strides = [1, 1]} : vector<128x256xf32> to vector<128x128xf32>
    %c1 = arith.constant 1 : index
    %c0_24 = arith.constant 0 : index
    %c0_25 = arith.constant 0 : index
    %31 = vector.load %arg6[%c1, %c0_24, %c0_25] : memref<2x128x128xf32, #tpu.memory_space<vmem>>, vector<1x128x128xf32>
    %32 = vector.shape_cast %31 : vector<1x128x128xf32> to vector<128x128xf32>
    %cst_26 = arith.constant dense<0.000000e+00> : vector<128x128xf32>
    %33 = tpu.matmul %30, %32, %cst_26 {dimension_numbers = #tpu.dot_dimension_numbers<[1], [0], [0], [1], [0, 0, 1, 1], [], []>} : vector<128x128xf32>, vector<128x128xf32>, vector<128x128xf32> -> vector<128x128xf32>
    %c1_27 = arith.constant 1 : index
    %c0_28 = arith.constant 0 : index
    %c0_29 = arith.constant 0 : index
    %34 = vector.load %arg7[%c1_27, %c0_28, %c0_29] : memref<2x1x128xf32, #tpu.memory_space<vmem>>, vector<1x1x128xf32>
    %35 = vector.shape_cast %34 : vector<1x1x128xf32> to vector<1x128xf32>
    %36 = vector.broadcast %35 : vector<1x128xf32> to vector<128x128xf32>
    %37 = arith.addf %33, %36 : vector<128x128xf32>
    %cst_30 = arith.constant 0.000000e+00 : f32
    %38 = vector.broadcast %cst_30 : f32 to vector<128x128xf32>
    %39 = arith.maximumf %37, %38 : vector<128x128xf32>
    %c1_31 = arith.constant 1 : index
    %c0_32 = arith.constant 0 : index
    %c0_33 = arith.constant 0 : index
    %40 = vector.load %arg8[%c1_31, %c0_32, %c0_33] : memref<2x1x128xf32, #tpu.memory_space<vmem>>, vector<1x1x128xf32>
    %41 = vector.shape_cast %40 : vector<1x1x128xf32> to vector<1x128xf32>
    %42 = vector.broadcast %41 : vector<1x128xf32> to vector<128x128xf32>
    %43 = arith.mulf %39, %42 : vector<128x128xf32>
    %cst_34 = arith.constant dense<0.000000e+00> : vector<128xf32>
    %44 = vector.multi_reduction <add>, %43, %cst_34 [1] : vector<128x128xf32> to vector<128xf32>
    %c1_35 = arith.constant 1 : index
    %45 = memref.load %arg9[%c1_35] : memref<2xf32, #tpu.memory_space<smem>>
    %46 = vector.broadcast %45 : f32 to vector<128xf32>
    %47 = arith.addf %44, %46 : vector<128xf32>
    %48 = vector.shape_cast %29 : vector<128xf32> to vector<1x128xf32>
    %49 = vector.shape_cast %47 : vector<128xf32> to vector<1x128xf32>
    %50 = tpu.concatenate %48, %49 in 0 : vector<1x128xf32>, vector<1x128xf32> -> vector<2x128xf32>
    %c0_36 = arith.constant 0 : index
    %c0_37 = arith.constant 0 : index
    %51 = vector.load %arg10[%c0_36, %c0_37] : memref<2x128xf32, #tpu.memory_space<vmem>>, vector<2x128xf32>
    tpu.vector_store %arg10[%c0_36, %c0_37], %50 {strides = array<i32>} : memref<2x128xf32, #tpu.memory_space<vmem>>, vector<2x128xf32>,
    return
  }
  func.func @transform_0(%arg0: i32) -> (i32, i32) {
    %c0_i32 = arith.constant 0 : i32
    %c0_i32_0 = arith.constant 0 : i32
    return %arg0, %c0_i32 : i32, i32
  }
  func.func @transform_1(%arg0: i32) -> (i32, i32) {
    %c0_i32 = arith.constant 0 : i32
    %c0_i32_0 = arith.constant 0 : i32
    return %arg0, %c0_i32 : i32, i32
  }
  func.func @transform_2(%arg0: i32) -> (i32, i32) {
    %c0_i32 = arith.constant 0 : i32
    %c0_i32_0 = arith.constant 0 : i32
    %c0_i32_1 = arith.constant 0 : i32
    return %c0_i32, %c0_i32_0 : i32, i32
  }
  func.func @transform_3(%arg0: i32) -> (i32, i32) {
    %c0_i32 = arith.constant 0 : i32
    %c0_i32_0 = arith.constant 0 : i32
    %c0_i32_1 = arith.constant 0 : i32
    return %c0_i32, %c0_i32_0 : i32, i32
  }
  func.func @transform_4(%arg0: i32) -> (i32, i32) {
    %c0_i32 = arith.constant 0 : i32
    %c0_i32_0 = arith.constant 0 : i32
    %c0_i32_1 = arith.constant 0 : i32
    return %c0_i32, %c0_i32_0 : i32, i32
  }
  func.func @transform_5(%arg0: i32) -> (i32, i32, i32) {
    %c0_i32 = arith.constant 0 : i32
    %c0_i32_0 = arith.constant 0 : i32
    %c0_i32_1 = arith.constant 0 : i32
    %c0_i32_2 = arith.constant 0 : i32
    return %c0_i32, %c0_i32_0, %c0_i32_1 : i32, i32, i32
  }
  func.func @transform_6(%arg0: i32) -> (i32, i32, i32) {
    %c0_i32 = arith.constant 0 : i32
    %c0_i32_0 = arith.constant 0 : i32
    %c0_i32_1 = arith.constant 0 : i32
    %c0_i32_2 = arith.constant 0 : i32
    return %c0_i32, %c0_i32_0, %c0_i32_1 : i32, i32, i32
  }
  func.func @transform_7(%arg0: i32) -> (i32, i32, i32) {
    %c0_i32 = arith.constant 0 : i32
    %c0_i32_0 = arith.constant 0 : i32
    %c0_i32_1 = arith.constant 0 : i32
    %c0_i32_2 = arith.constant 0 : i32
    return %c0_i32, %c0_i32_0, %c0_i32_1 : i32, i32, i32
  }
  func.func @transform_8(%arg0: i32) -> i32 {
    %c0_i32 = arith.constant 0 : i32
    %c0_i32_0 = arith.constant 0 : i32
    return %c0_i32 : i32
  }
  func.func @transform_9(%arg0: i32) -> (i32, i32) {
    %c0_i32 = arith.constant 0 : i32
    %c0_i32_0 = arith.constant 0 : i32
    return %c0_i32, %arg0 : i32, i32
  }
}

</mosaic_0001>

<llo_original>
// kernel: tpu_custom_call.1
$region0: #{tpu_custom_call.1}
  #allocation0 [shape = 'u32[]', space=smem, size = 0x4, offset = 0x4, fixed_abs, tag = 'smem constant byte address 0x4 - core index']
  #allocation1 [shape = 'u32[144,128]{1,0:T(1,128)}', space=vmem, size = 0x12000, scoped, tag = 'internal scratch']
  %s0 = inlined_call_operand.hbm [shape: f32[2,32], index: 0, kind: input, shape index: {}]
  %s1 = inlined_call_operand.vmem [shape: f32[2,4], index: 1, kind: input, shape index: {}]
  %s2 = inlined_call_operand.hbm [shape: f32[32,256], index: 2, kind: input, shape index: {}]
  %s3 = inlined_call_operand.vmem [shape: f32[4,256], index: 3, kind: input, shape index: {}]
  %s4 = inlined_call_operand.vmem [shape: f32[1,256], index: 4, kind: input, shape index: {}]
  %s5 = inlined_call_operand.hbm [shape: f32[2,128,128], index: 5, kind: input, shape index: {}]
  %s6 = inlined_call_operand.vmem [shape: f32[2,1,128], index: 6, kind: input, shape index: {}]
  %s7 = inlined_call_operand.vmem [shape: f32[2,1,128], index: 7, kind: input, shape index: {}]
  %s8 = inlined_call_operand.vmem [shape: f32[2], index: 8, kind: input, shape index: {}]
  %s9 = inlined_call_operand.hbm [shape: f32[2,128], index: 9, kind: output, shape index: {}]
  %s10 = sld [smem:[#allocation0]]
  $region62: #{tpu_custom_call.1} parent=0
    _
  %s12 = ssub.s32 1, %s10
  %s13 = scalar_select 0, %s12, %s10
  $region1: #{tpu_custom_call.1} parent=0
    #allocation2 [shape = 'u8[65536]{0}', space=vmem, size = 0x10000, scoped, tag = 'input window, operand 0, single buffered']
    #allocation3 [shape = 's32[1]{0}', space=sflag, size = 0x4, scoped, tag = 'scoped memory for tpu_custom_call.1']
    #allocation4 [shape = 's32[1]{0}', space=sflag, size = 0x4, scoped, tag = 'scoped memory for tpu_custom_call.1']
    #allocation5 [shape = 's32[1]{0}', space=sflag, size = 0x4, scoped, tag = 'scoped memory for tpu_custom_call.1']
    #allocation6 [shape = 'u8[32768]{0}', space=vmem, size = 0x8000, scoped, tag = 'input window, operand 2, single buffered']
    #allocation7 [shape = 's32[1]{0}', space=sflag, size = 0x4, scoped, tag = 'scoped memory for tpu_custom_call.1']
    #allocation8 [shape = 'u8[131072]{0}', space=vmem, size = 0x20000, scoped, tag = 'input window, operand 5, single buffered']
    #allocation9 [shape = 'u8[512]{0}', space=smem, size = 0x200, scoped, tag = 'input window, operand 8, single buffered']
    #allocation10 [shape = 'u8[1024]{0}', space=vmem, size = 0x400, scoped, tag = 'output window, operand 0, single buffered']
    %14 = vsyncpa [#allocation3], 0
    %15 = vsyncpa [#allocation7], 0
    %16 = vsyncpa [#allocation5], 0
    %17 = vsyncpa [#allocation4], 0
    // Predicated region
    $region2: #{tpu_custom_call.1} parent=1 // pred_check
      _
    $region3: #{tpu_custom_call.1} parent=1 // pred_check_branch
      %19 = sbr.rel (0) target = $region5
    $region4: #{tpu_custom_call.1} parent=1 // pred_region
      %s21 = ssub.s32 2048, 32
      %22 = vsyncadd [#allocation3], %s21
      %s23 = sshll.u32 [#allocation2], 4
      %s24 = int_to_ptr.vmem [resolvable:$true] %s23
      %29 = dma.hbm_to_vmem [thread:$0]  %s0, 32, %s24, [#allocation3], 32, 32, 2
    $region5: #{tpu_custom_call.1} parent=1 // pred_fallthru
      _
    // Predicated region
    $region6: #{tpu_custom_call.1} parent=1 // pred_check
      _
    $region7: #{tpu_custom_call.1} parent=1 // pred_check_branch
      %31 = sbr.rel (0) target = $region9
    $region8: #{tpu_custom_call.1} parent=1 // pred_region
      _
    $region9: #{tpu_custom_call.1} parent=1 // pred_fallthru
      _
    // Predicated region
    $region10: #{tpu_custom_call.1} parent=1 // pred_check
      _
    $region11: #{tpu_custom_call.1} parent=1 // pred_check_branch
      %33 = sbr.rel (0) target = $region13
    $region12: #{tpu_custom_call.1} parent=1 // pred_region
      %s35 = ssub.s32 1024, 1024
      %36 = vsyncadd [#allocation7], %s35
      %s37 = sshll.u32 [#allocation6], 4
      %s38 = int_to_ptr.vmem [resolvable:$true] %s37
      %43 = dma.hbm_to_vmem [thread:$0]  %s2, 1024, %s38, [#allocation7], 256, 256, 16
    $region13: #{tpu_custom_call.1} parent=1 // pred_fallthru
      _
    // Predicated region
    $region14: #{tpu_custom_call.1} parent=1 // pred_check
      _
    $region15: #{tpu_custom_call.1} parent=1 // pred_check_branch
      %45 = sbr.rel (0) target = $region17
    $region16: #{tpu_custom_call.1} parent=1 // pred_region
      _
    $region17: #{tpu_custom_call.1} parent=1 // pred_fallthru
      _
    // Predicated region
    $region18: #{tpu_custom_call.1} parent=1 // pred_check
      _
    $region19: #{tpu_custom_call.1} parent=1 // pred_check_branch
      %47 = sbr.rel (0) target = $region21
    $region20: #{tpu_custom_call.1} parent=1 // pred_region
      _
    $region21: #{tpu_custom_call.1} parent=1 // pred_fallthru
      _
    // Predicated region
    $region22: #{tpu_custom_call.1} parent=1 // pred_check
      _
    $region23: #{tpu_custom_call.1} parent=1 // pred_check_branch
      %49 = sbr.rel (0) target = $region25
    $region24: #{tpu_custom_call.1} parent=1 // pred_region
      %s51 = ssub.s32 4096, 4096
      %52 = vsyncadd [#allocation7], %s51
      %s53 = sshll.u32 [#allocation8], 4
      %s54 = int_to_ptr.vmem [resolvable:$true] %s53
      %59 = dma.hbm_to_vmem [thread:$0]  %s5, 4096, %s54, [#allocation7], 128, 128, 8
    $region25: #{tpu_custom_call.1} parent=1 // pred_fallthru
      _
    // Predicated region
    $region26: #{tpu_custom_call.1} parent=1 // pred_check
      _
    $region27: #{tpu_custom_call.1} parent=1 // pred_check_branch
      %61 = sbr.rel (0) target = $region29
    $region28: #{tpu_custom_call.1} parent=1 // pred_region
      _
    $region29: #{tpu_custom_call.1} parent=1 // pred_fallthru
      _
    // Predicated region
    $region30: #{tpu_custom_call.1} parent=1 // pred_check
      _
    $region31: #{tpu_custom_call.1} parent=1 // pred_check_branch
      %63 = sbr.rel (0) target = $region33
    $region32: #{tpu_custom_call.1} parent=1 // pred_region
      _
    $region33: #{tpu_custom_call.1} parent=1 // pred_fallthru
      _
    // Predicated region
    $region34: #{tpu_custom_call.1} parent=1 // pred_check
      _
    $region35: #{tpu_custom_call.1} parent=1 // pred_check_branch
      %65 = sbr.rel (0) target = $region37
    $region36: #{tpu_custom_call.1} parent=1 // pred_region
      %s67 = ssub.s32 16, 16
      %68 = vsyncadd [#allocation5], %s67
      %s70 = sshll.u32 %s8, 4
      %s71 = int_to_ptr.vmem [resolvable:$true] %s70
      %73 = dma.vmem_to_smem %s71, 16, [#allocation9], [#allocation5]
    $region37: #{tpu_custom_call.1} parent=1 // pred_fallthru
      _
    // Predicated region
    $region38: #{tpu_custom_call.1} parent=1 // pred_check
      _
    $region39: #{tpu_custom_call.1} parent=1 // pred_check_branch
      %75 = sbr.rel (0) target = $region41
    $region40: #{tpu_custom_call.1} parent=1 // pred_region
      %76 = dma.done [#allocation3], 2048
    $region41: #{tpu_custom_call.1} parent=1 // pred_fallthru
      _
    // Predicated region
    $region42: #{tpu_custom_call.1} parent=1 // pred_check
      _
    $region43: #{tpu_custom_call.1} parent=1 // pred_check_branch
      %78 = sbr.rel (0) target = $region45
    $region44: #{tpu_custom_call.1} parent=1 // pred_region
      %79 = dma.done [#allocation7], 1024
    $region45: #{tpu_custom_call.1} parent=1 // pred_fallthru
      _
    // Predicated region
    $region46: #{tpu_custom_call.1} parent=1 // pred_check
      _
    $region47: #{tpu_custom_call.1} parent=1 // pred_check_branch
      %81 = sbr.rel (0) target = $region49
    $region48: #{tpu_custom_call.1} parent=1 // pred_region
      %82 = dma.done [#allocation7], 4096
    $region49: #{tpu_custom_call.1} parent=1 // pred_fallthru
      _
    // Predicated region
    $region50: #{tpu_custom_call.1} parent=1 // pred_check
      _
    $region51: #{tpu_custom_call.1} parent=1 // pred_check_branch
      %84 = sbr.rel (0) target = $region53
    $region52: #{tpu_custom_call.1} parent=1 // pred_region
      %85 = dma.done [#allocation5], 16
    $region53: #{tpu_custom_call.1} parent=1 // pred_fallthru
      _
    %86 = sfence
    %v87 = vld [vmem:[#allocation2] sm:$0xff]
    %v88 = vld [vmem:[#allocation2 + $0x8] sm:$0xff]
    %v89 = vld [vmem:[#allocation2 + $0x10] sm:$0xff]
    %v90 = vld [vmem:[#allocation2 + $0x18] sm:$0xff]
    %v91 = vld [vmem:[#allocation2 + $0x20] sm:$0xff]
    %v92 = vld [vmem:[#allocation2 + $0x28] sm:$0xff]
    %v93 = vld [vmem:[#allocation2 + $0x30] sm:$0xff]
    %v94 = vld [vmem:[#allocation2 + $0x38] sm:$0xff]
    %v95 = vld [vmem:[#allocation2 + $0x40] sm:$0xff]
    %v96 = vld [vmem:[#allocation2 + $0x48] sm:$0xff]
    %v97 = vld [vmem:[#allocation2 + $0x50] sm:$0xff]
    %v98 = vld [vmem:[#allocation2 + $0x58] sm:$0xff]
    %v99 = vld [vmem:[#allocation2 + $0x60] sm:$0xff]
    %v100 = vld [vmem:[#allocation2 + $0x68] sm:$0xff]
    %v101 = vld [vmem:[#allocation2 + $0x70] sm:$0xff]
    %v102 = vld [vmem:[#allocation2 + $0x78] sm:$0xff]
    %v103 = vld [vmem:[%s1] sm:$0xff]
    %v104 = vld [vmem:[%s1 + $0x8] sm:$0xff]
    %v105 = vld [vmem:[%s1 + $0x10] sm:$0xff]
    %v106 = vld [vmem:[%s1 + $0x18] sm:$0xff]
    %v107 = vld [vmem:[%s1 + $0x20] sm:$0xff]
    %v108 = vld [vmem:[%s1 + $0x28] sm:$0xff]
    %v109 = vld [vmem:[%s1 + $0x30] sm:$0xff]
    %v110 = vld [vmem:[%s1 + $0x38] sm:$0xff]
    %v111 = vld [vmem:[%s1 + $0x40] sm:$0xff]
    %v112 = vld [vmem:[%s1 + $0x48] sm:$0xff]
    %v113 = vld [vmem:[%s1 + $0x50] sm:$0xff]
    %v114 = vld [vmem:[%s1 + $0x58] sm:$0xff]
    %v115 = vld [vmem:[%s1 + $0x60] sm:$0xff]
    %v116 = vld [vmem:[%s1 + $0x68] sm:$0xff]
    %v117 = vld [vmem:[%s1 + $0x70] sm:$0xff]
    %v118 = vld [vmem:[%s1 + $0x78] sm:$0xff]
    %v119 = vld [vmem:[#allocation6] sm:$0xff]
    %v120 = vld [vmem:[#allocation6 + $0x8] sm:$0xff]
    %v121 = vld [vmem:[#allocation6 + $0x10] sm:$0xff]
    %v122 = vld [vmem:[#allocation6 + $0x18] sm:$0xff]
    %v123 = vld [vmem:[#allocation6 + $0x20] sm:$0xff]
    %v124 = vld [vmem:[#allocation6 + $0x28] sm:$0xff]
    %v125 = vld [vmem:[#allocation6 + $0x30] sm:$0xff]
    %v126 = vld [vmem:[#allocation6 + $0x38] sm:$0xff]
    %v127 = vld [vmem:[%s3] sm:$0xff]
    %v129 = vcombine.high %v127, %v127
    %vm130 = vcmask 31744
    %v132 = vsel %vm130, %v103, 0
    %v135 = vsel %vm130, %v104, 0
    %v138 = vsel %vm130, %v105, 0
    %v141 = vsel %vm130, %v106, 0
    %v144 = vsel %vm130, %v107, 0
    %v147 = vsel %vm130, %v108, 0
    %v150 = vsel %vm130, %v109, 0
    %v153 = vsel %vm130, %v110, 0
    %v156 = vsel %vm130, %v111, 0
    %v159 = vsel %vm130, %v112, 0
    %v162 = vsel %vm130, %v113, 0
    %v165 = vsel %vm130, %v114, 0
    %v168 = vsel %vm130, %v115, 0
    %v171 = vsel %vm130, %v116, 0
    %v174 = vsel %vm130, %v117, 0
    %v177 = vsel %vm130, %v118, 0
    %vm179 = vcmask 1043456
    %v180 = vsel %vm179, %v127, 0
    %v182 = vsel %vm179, %v129, 0
    %184 = vmatprep.subr.mxu0 %v182
    %185 = vmatpush1.msra.mxu0 %v180
    %186 = vmatprep.subr.mxu0 0.0
    %187 = vmatpush1.msra.mxu0 0.0
    %188 = vmatprep.subr.mxu0 0.0
    %189 = vmatpush1.msra.mxu0 0.0
    %190 = vmatprep.subr.mxu0 0.0
    %191 = vmatpush1.msra.mxu0 0.0
    %192 = vmatprep.subr.mxu0 0.0
    %193 = vmatpush1.msra.mxu0 0.0
    %194 = vmatprep.subr.mxu0 0.0
    %195 = vmatpush1.msra.mxu0 0.0
    %196 = vmatprep.subr.mxu0 0.0
    %197 = vmatpush1.msra.mxu0 0.0
    %198 = vmatprep.subr.mxu0 0.0
    %199 = vmatpush1.msra.mxu0 0.0
    %200 = vmatprep.subr.mxu0 0.0
    %201 = vmatpush1.msra.mxu0 0.0
    %202 = vmatprep.subr.mxu0 0.0
    %203 = vmatpush1.msra.mxu0 0.0
    %204 = vmatprep.subr.mxu0 0.0
    %205 = vmatpush1.msra.mxu0 0.0
    %206 = vmatprep.subr.mxu0 0.0
    %207 = vmatpush1.msra.mxu0 0.0
    %208 = vmatprep.subr.mxu0 0.0
    %209 = vmatpush1.msra.mxu0 0.0
    %210 = vmatprep.subr.mxu0 0.0
    %211 = vmatpush1.msra.mxu0 0.0
    %212 = vmatprep.subr.mxu0 0.0
    %213 = vmatpush1.msra.mxu0 0.0
    %214 = vmatprep.subr.mxu0 0.0
    %215 = vmatpush1.msra.mxu0 0.0
    %216 = vmatprep.subr.mxu0 0.0
    %217 = vmatpush1.msra.mxu0 0.0
    %218 = vmatprep.subr.mxu0 0.0
    %219 = vmatpush1.msra.mxu0 0.0
    %220 = vmatprep.subr.mxu0 0.0
    %221 = vmatpush1.msra.mxu0 0.0
    %222 = vmatprep.subr.mxu0 0.0
    %223 = vmatpush1.msra.mxu0 0.0
    %224 = vmatprep.subr.mxu0 0.0
    %225 = vmatpush1.msra.mxu0 0.0
    %226 = vmatprep.subr.mxu0 0.0
    %227 = vmatpush1.msra.mxu0 0.0
    %228 = vmatprep.subr.mxu0 0.0
    %229 = vmatpush1.msra.mxu0 0.0
    %230 = vmatprep.subr.mxu0 0.0
    %231 = vmatpush1.msra.mxu0 0.0
    %232 = vmatprep.subr.mxu0 0.0
    %233 = vmatpush1.msra.mxu0 0.0
    %234 = vmatprep.subr.mxu0 0.0
    %235 = vmatpush1.msra.mxu0 0.0
    %236 = vmatprep.subr.mxu0 0.0
    %237 = vmatpush1.msra.mxu0 0.0
    %238 = vmatprep.subr.mxu0 0.0
    %239 = vmatpush1.msra.mxu0 0.0
    %240 = vmatprep.subr.mxu0 0.0
    %241 = vmatpush1.msra.mxu0 0.0
    %242 = vmatprep.subr.mxu0 0.0
    %243 = vmatpush1.msra.mxu0 0.0
    %244 = vmatprep.subr.mxu0 0.0
    %245 = vmatpush1.msra.mxu0 0.0
    %246 = vmatprep.subr.mxu0 0.0
    %247 = vmatpush1.msra.mxu0 0.0
    %248 = vmatprep.mubr.f32.mxu0 0.0
    %249 = vmatmul.mubr.f32.gmra.mrb[0].mxu0 %v132
    %v250 = vpop.f32.mrb[0].mxu0
    %v251 = vadd.f32 0.0, %v250
    %v252 = vpop.f32.mrb[0].mxu0
    %v253 = vadd.f32 0.0, %v252
    %254 = vmatprep.mubr.f32.mxu0 0.0
    %255 = vmatmul.mubr.f32.gmra.mrb[0].mxu0 %v135
    %v256 = vpop.f32.mrb[0].mxu0
    %v257 = vadd.f32 0.0, %v256
    %v258 = vpop.f32.mrb[0].mxu0
    %v259 = vadd.f32 0.0, %v258
    %260 = vmatprep.mubr.f32.mxu0 0.0
    %261 = vmatmul.mubr.f32.gmra.mrb[0].mxu0 %v138
    %v262 = vpop.f32.mrb[0].mxu0
    %v263 = vadd.f32 0.0, %v262
    %v264 = vpop.f32.mrb[0].mxu0
    %v265 = vadd.f32 0.0, %v264
    %266 = vmatprep.mubr.f32.mxu0 0.0
    %267 = vmatmul.mubr.f32.gmra.mrb[0].mxu0 %v141
    %v268 = vpop.f32.mrb[0].mxu0
    %v269 = vadd.f32 0.0, %v268
    %v270 = vpop.f32.mrb[0].mxu0
    %v271 = vadd.f32 0.0, %v270
    %272 = vmatprep.mubr.f32.mxu0 0.0
    %273 = vmatmul.mubr.f32.gmra.mrb[0].mxu0 %v144
    %v274 = vpop.f32.mrb[0].mxu0
    %v275 = vadd.f32 0.0, %v274
    %v276 = vpop.f32.mrb[0].mxu0
    %v277 = vadd.f32 0.0, %v276
    %278 = vmatprep.mubr.f32.mxu0 0.0
    %279 = vmatmul.mubr.f32.gmra.mrb[0].mxu0 %v147
    %v280 = vpop.f32.mrb[0].mxu0
    %v281 = vadd.f32 0.0, %v280
    %v282 = vpop.f32.mrb[0].mxu0
    %v283 = vadd.f32 0.0, %v282
    %284 = vmatprep.mubr.f32.mxu0 0.0
    %285 = vmatmul.mubr.f32.gmra.mrb[0].mxu0 %v150
    %v286 = vpop.f32.mrb[0].mxu0
    %v287 = vadd.f32 0.0, %v286
    %v288 = vpop.f32.mrb[0].mxu0
    %v289 = vadd.f32 0.0, %v288
    %290 = vmatprep.mubr.f32.mxu0 0.0
    %291 = vmatmul.mubr.f32.gmra.mrb[0].mxu0 %v153
    %v292 = vpop.f32.mrb[0].mxu0
    %v293 = vadd.f32 0.0, %v292
    %v294 = vpop.f32.mrb[0].mxu0
    %v295 = vadd.f32 0.0, %v294
    %296 = vmatprep.mubr.f32.mxu0 0.0
    %297 = vmatmul.mubr.f32.gmra.mrb[0].mxu0 %v156
    %v298 = vpop.f32.mrb[0].mxu0
    %v299 = vadd.f32 0.0, %v298
    %v300 = vpop.f32.mrb[0].mxu0
    %v301 = vadd.f32 0.0, %v300
    %302 = vmatprep.mubr.f32.mxu0 0.0
    %303 = vmatmul.mubr.f32.gmra.mrb[0].mxu0 %v159
    %v304 = vpop.f32.mrb[0].mxu0
    %v305 = vadd.f32 0.0, %v304
    %v306 = vpop.f32.mrb[0].mxu0
    %v307 = vadd.f32 0.0, %v306
    %308 = vmatprep.mubr.f32.mxu0 0.0
    %309 = vmatmul.mubr.f32.gmra.mrb[0].mxu0 %v162
    %v310 = vpop.f32.mrb[0].mxu0
    %v311 = vadd.f32 0.0, %v310
    %v312 = vpop.f32.mrb[0].mxu0
    %v313 = vadd.f32 0.0, %v312
    %314 = vmatprep.mubr.f32.mxu0 0.0
    %315 = vmatmul.mubr.f32.gmra.mrb[0].mxu0 %v165
    %v316 = vpop.f32.mrb[0].mxu0
    %v317 = vadd.f32 0.0, %v316
    %v318 = vpop.f32.mrb[0].mxu0
    %v319 = vadd.f32 0.0, %v318
    %320 = vmatprep.mubr.f32.mxu0 0.0
    %321 = vmatmul.mubr.f32.gmra.mrb[0].mxu0 %v168
    %v322 = vpop.f32.mrb[0].mxu0
    %v323 = vadd.f32 0.0, %v322
    %v324 = vpop.f32.mrb[0].mxu0
    %v325 = vadd.f32 0.0, %v324
    %326 = vmatprep.mubr.f32.mxu0 0.0
    %327 = vmatmul.mubr.f32.gmra.mrb[0].mxu0 %v171
    %v328 = vpop.f32.mrb[0].mxu0
    %v329 = vadd.f32 0.0, %v328
    %v330 = vpop.f32.mrb[0].mxu0
    %v331 = vadd.f32 0.0, %v330
    %332 = vmatprep.mubr.f32.mxu0 0.0
    %333 = vmatmul.mubr.f32.gmra.mrb[0].mxu0 %v174
    %v334 = vpop.f32.mrb[0].mxu0
    %v335 = vadd.f32 0.0, %v334
    %v336 = vpop.f32.mrb[0].mxu0
    %v337 = vadd.f32 0.0, %v336
    %338 = vmatprep.mubr.f32.mxu0 0.0
    %339 = vmatmul.mubr.f32.gmra.mrb[0].mxu0 %v177
    %v340 = vpop.f32.mrb[0].mxu0
    %v341 = vadd.f32 0.0, %v340
    %v342 = vpop.f32.mrb[0].mxu0
    %v343 = vadd.f32 0.0, %v342
    %344 = vdwg.mxu0
    %vm345 = vcmask 261120
    %v347 = vsel %vm345, %v87, 0
    %v350 = vsel %vm345, %v88, 0
    %v353 = vsel %vm345, %v89, 0
    %v356 = vsel %vm345, %v90, 0
    %v359 = vsel %vm345, %v91, 0
    %v362 = vsel %vm345, %v92, 0
    %v365 = vsel %vm345, %v93, 0
    %v368 = vsel %vm345, %v94, 0
    %v371 = vsel %vm345, %v95, 0
    %v374 = vsel %vm345, %v96, 0
    %v377 = vsel %vm345, %v97, 0
    %v380 = vsel %vm345, %v98, 0
    %v383 = vsel %vm345, %v99, 0
    %v386 = vsel %vm345, %v100, 0
    %v389 = vsel %vm345, %v101, 0
    %v392 = vsel %vm345, %v102, 0
    %394 = vmatprep.subr.mxu0 %v120
    %395 = vmatpush1.msra.mxu0 %v119
    %396 = vmatprep.subr.mxu0 %v122
    %397 = vmatpush1.msra.mxu0 %v121
    %398 = vmatprep.subr.mxu0 %v124
    %399 = vmatpush1.msra.mxu0 %v123
    %400 = vmatprep.subr.mxu0 %v126
    %401 = vmatpush1.msra.mxu0 %v125
    %402 = vmatprep.subr.mxu0 0.0
    %403 = vmatpush1.msra.mxu0 0.0
    %404 = vmatprep.subr.mxu0 0.0
    %405 = vmatpush1.msra.mxu0 0.0
    %406 = vmatprep.subr.mxu0 0.0
    %407 = vmatpush1.msra.mxu0 0.0
    %408 = vmatprep.subr.mxu0 0.0
    %409 = vmatpush1.msra.mxu0 0.0
    %410 = vmatprep.subr.mxu0 0.0
    %411 = vmatpush1.msra.mxu0 0.0
    %412 = vmatprep.subr.mxu0 0.0
    %413 = vmatpush1.msra.mxu0 0.0
    %414 = vmatprep.subr.mxu0 0.0
    %415 = vmatpush1.msra.mxu0 0.0
    %416 = vmatprep.subr.mxu0 0.0
    %417 = vmatpush1.msra.mxu0 0.0
    %418 = vmatprep.subr.mxu0 0.0
    %419 = vmatpush1.msra.mxu0 0.0
    %420 = vmatprep.subr.mxu0 0.0
    %421 = vmatpush1.msra.mxu0 0.0
    %422 = vmatprep.subr.mxu0 0.0
    %423 = vmatpush1.msra.mxu0 0.0
    %424 = vmatprep.subr.mxu0 0.0
    %425 = vmatpush1.msra.mxu0 0.0
    %426 = vmatprep.subr.mxu0 0.0
    %427 = vmatpush1.msra.mxu0 0.0
    %428 = vmatprep.subr.mxu0 0.0
    %429 = vmatpush1.msra.mxu0 0.0
    %430 = vmatprep.subr.mxu0 0.0
    %431 = vmatpush1.msra.mxu0 0.0
    %432 = vmatprep.subr.mxu0 0.0
    %433 = vmatpush1.msra.mxu0 0.0
    %434 = vmatprep.subr.mxu0 0.0
    %435 = vmatpush1.msra.mxu0 0.0
    %436 = vmatprep.subr.mxu0 0.0
    %437 = vmatpush1.msra.mxu0 0.0
    %438 = vmatprep.subr.mxu0 0.0
    %439 = vmatpush1.msra.mxu0 0.0
    %440 = vmatprep.subr.mxu0 0.0
    %441 = vmatpush1.msra.mxu0 0.0
    %442 = vmatprep.subr.mxu0 0.0
    %443 = vmatpush1.msra.mxu0 0.0
    %444 = vmatprep.subr.mxu0 0.0
    %445 = vmatpush1.msra.mxu0 0.0
    %446 = vmatprep.subr.mxu0 0.0
    %447 = vmatpush1.msra.mxu0 0.0
    %448 = vmatprep.subr.mxu0 0.0
    %449 = vmatpush1.msra.mxu0 0.0
    %450 = vmatprep.subr.mxu0 0.0
    %451 = vmatpush1.msra.mxu0 0.0
    %452 = vmatprep.subr.mxu0 0.0
    %453 = vmatpush1.msra.mxu0 0.0
    %454 = vmatprep.subr.mxu0 0.0
    %455 = vmatpush1.msra.mxu0 0.0
    %456 = vmatprep.subr.mxu0 0.0
    %457 = vmatpush1.msra.mxu0 0.0
    %458 = vmatprep.mubr.f32.mxu0 0.0
    %459 = vmatmul.mubr.f32.gmra.mrb[0].mxu0 %v347
    %v460 = vpop.f32.mrb[0].mxu0
    %v461 = vadd.f32 %v251, %v460
    %v462 = vpop.f32.mrb[0].mxu0
    %v463 = vadd.f32 %v253, %v462
    %464 = vmatprep.mubr.f32.mxu0 0.0
    %465 = vmatmul.mubr.f32.gmra.mrb[0].mxu0 %v350
    %v466 = vpop.f32.mrb[0].mxu0
    %v467 = vadd.f32 %v257, %v466
    %v468 = vpop.f32.mrb[0].mxu0
    %v469 = vadd.f32 %v259, %v468
    %470 = vmatprep.mubr.f32.mxu0 0.0
    %471 = vmatmul.mubr.f32.gmra.mrb[0].mxu0 %v353
    %v472 = vpop.f32.mrb[0].mxu0
    %v473 = vadd.f32 %v263, %v472
    %v474 = vpop.f32.mrb[0].mxu0
    %v475 = vadd.f32 %v265, %v474
    %476 = vmatprep.mubr.f32.mxu0 0.0
    %477 = vmatmul.mubr.f32.gmra.mrb[0].mxu0 %v356
    %v478 = vpop.f32.mrb[0].mxu0
    %v479 = vadd.f32 %v269, %v478
    %v480 = vpop.f32.mrb[0].mxu0
    %v481 = vadd.f32 %v271, %v480
    %482 = vmatprep.mubr.f32.mxu0 0.0
    %483 = vmatmul.mubr.f32.gmra.mrb[0].mxu0 %v359
    %v484 = vpop.f32.mrb[0].mxu0
    %v485 = vadd.f32 %v275, %v484
    %v486 = vpop.f32.mrb[0].mxu0
    %v487 = vadd.f32 %v277, %v486
    %488 = vmatprep.mubr.f32.mxu0 0.0
    %489 = vmatmul.mubr.f32.gmra.mrb[0].mxu0 %v362
    %v490 = vpop.f32.mrb[0].mxu0
    %v491 = vadd.f32 %v281, %v490
    %v492 = vpop.f32.mrb[0].mxu0
    %v493 = vadd.f32 %v283, %v492
    %494 = vmatprep.mubr.f32.mxu0 0.0
    %495 = vmatmul.mubr.f32.gmra.mrb[0].mxu0 %v365
    %v496 = vpop.f32.mrb[0].mxu0
    %v497 = vadd.f32 %v287, %v496
    %v498 = vpop.f32.mrb[0].mxu0
    %v499 = vadd.f32 %v289, %v498
    %500 = vmatprep.mubr.f32.mxu0 0.0
    %501 = vmatmul.mubr.f32.gmra.mrb[0].mxu0 %v368
    %v502 = vpop.f32.mrb[0].mxu0
    %v503 = vadd.f32 %v293, %v502
    %v504 = vpop.f32.mrb[0].mxu0
    %v505 = vadd.f32 %v295, %v504
    %506 = vmatprep.mubr.f32.mxu0 0.0
    %507 = vmatmul.mubr.f32.gmra.mrb[0].mxu0 %v371
    %v508 = vpop.f32.mrb[0].mxu0
    %v509 = vadd.f32 %v299, %v508
    %v510 = vpop.f32.mrb[0].mxu0
    %v511 = vadd.f32 %v301, %v510
    %512 = vmatprep.mubr.f32.mxu0 0.0
    %513 = vmatmul.mubr.f32.gmra.mrb[0].mxu0 %v374
    %v514 = vpop.f32.mrb[0].mxu0
    %v515 = vadd.f32 %v305, %v514
    %v516 = vpop.f32.mrb[0].mxu0
    %v517 = vadd.f32 %v307, %v516
    %518 = vmatprep.mubr.f32.mxu0 0.0
    %519 = vmatmul.mubr.f32.gmra.mrb[0].mxu0 %v377
    %v520 = vpop.f32.mrb[0].mxu0
    %v521 = vadd.f32 %v311, %v520
    %v522 = vpop.f32.mrb[0].mxu0
    %v523 = vadd.f32 %v313, %v522
    %524 = vmatprep.mubr.f32.mxu0 0.0
    %525 = vmatmul.mubr.f32.gmra.mrb[0].mxu0 %v380
    %v526 = vpop.f32.mrb[0].mxu0
    %v527 = vadd.f32 %v317, %v526
    %v528 = vpop.f32.mrb[0].mxu0
    %v529 = vadd.f32 %v319, %v528
    %530 = vmatprep.mubr.f32.mxu0 0.0
    %531 = vmatmul.mubr.f32.gmra.mrb[0].mxu0 %v383
    %v532 = vpop.f32.mrb[0].mxu0
    %v533 = vadd.f32 %v323, %v532
    %v534 = vpop.f32.mrb[0].mxu0
    %v535 = vadd.f32 %v325, %v534
    %536 = vmatprep.mubr.f32.mxu0 0.0
    %537 = vmatmul.mubr.f32.gmra.mrb[0].mxu0 %v386
    %v538 = vpop.f32.mrb[0].mxu0
    %v539 = vadd.f32 %v329, %v538
    %v540 = vpop.f32.mrb[0].mxu0
    %v541 = vadd.f32 %v331, %v540
    %542 = vmatprep.mubr.f32.mxu0 0.0
    %543 = vmatmul.mubr.f32.gmra.mrb[0].mxu0 %v389
    %v544 = vpop.f32.mrb[0].mxu0
    %v545 = vadd.f32 %v335, %v544
    %v546 = vpop.f32.mrb[0].mxu0
    %v547 = vadd.f32 %v337, %v546
    %548 = vmatprep.mubr.f32.mxu0 0.0
    %549 = vmatmul.mubr.f32.gmra.mrb[0].mxu0 %v392
    %v550 = vpop.f32.mrb[0].mxu0
    %v551 = vadd.f32 %v341, %v550
    %v552 = vpop.f32.mrb[0].mxu0
    %v553 = vadd.f32 %v343, %v552
    %554 = vdwg.mxu0
    %v555 = vld [vmem:[%s4] sm:$0x3]
    %v557 = vlaneseq
    %v558 = vshrl.u32 %v557, 7
    %v559 = vsub.s32 0, %v558
    %v560 = vrot.slane %v555, %v559
    %v561 = vlaneseq
    %v562 = vshrl.u32 %v561, 7
    %v563 = vsub.s32 1, %v562
    %v564 = vrot.slane %v555, %v563
    %v567 = vadd.f32 %v461, %v560
    %v568 = vadd.f32 %v463, %v564
    %v569 = vadd.f32 %v467, %v560
    %v570 = vadd.f32 %v469, %v564
    %v571 = vadd.f32 %v473, %v560
    %v572 = vadd.f32 %v475, %v564
    %v573 = vadd.f32 %v479, %v560
    %v574 = vadd.f32 %v481, %v564
    %v575 = vadd.f32 %v485, %v560
    %v576 = vadd.f32 %v487, %v564
    %v577 = vadd.f32 %v491, %v560
    %v578 = vadd.f32 %v493, %v564
    %v579 = vadd.f32 %v497, %v560
    %v580 = vadd.f32 %v499, %v564
    %v581 = vadd.f32 %v503, %v560
    %v582 = vadd.f32 %v505, %v564
    %v583 = vadd.f32 %v509, %v560
    %v584 = vadd.f32 %v511, %v564
    %v585 = vadd.f32 %v515, %v560
    %v586 = vadd.f32 %v517, %v564
    %v587 = vadd.f32 %v521, %v560
    %v588 = vadd.f32 %v523, %v564
    %v589 = vadd.f32 %v527, %v560
    %v590 = vadd.f32 %v529, %v564
    %v591 = vadd.f32 %v533, %v560
    %v592 = vadd.f32 %v535, %v564
    %v593 = vadd.f32 %v539, %v560
    %v594 = vadd.f32 %v541, %v564
    %v595 = vadd.f32 %v545, %v560
    %v596 = vadd.f32 %v547, %v564
    %v597 = vadd.f32 %v551, %v560
    %v598 = vadd.f32 %v553, %v564
    %v599 = vmax.f32 %v567, 0.0
    %v600 = vmax.f32 %v568, 0.0
    %v601 = vmax.f32 %v569, 0.0
    %v602 = vmax.f32 %v570, 0.0
    %v603 = vmax.f32 %v571, 0.0
    %v604 = vmax.f32 %v572, 0.0
    %v605 = vmax.f32 %v573, 0.0
    %v606 = vmax.f32 %v574, 0.0
    %v607 = vmax.f32 %v575, 0.0
    %v608 = vmax.f32 %v576, 0.0
    %v609 = vmax.f32 %v577, 0.0
    %v610 = vmax.f32 %v578, 0.0
    %v611 = vmax.f32 %v579, 0.0
    %v612 = vmax.f32 %v580, 0.0
    %v613 = vmax.f32 %v581, 0.0
    %v614 = vmax.f32 %v582, 0.0
    %v615 = vmax.f32 %v583, 0.0
    %v616 = vmax.f32 %v584, 0.0
    %v617 = vmax.f32 %v585, 0.0
    %v618 = vmax.f32 %v586, 0.0
    %v619 = vmax.f32 %v587, 0.0
    %v620 = vmax.f32 %v588, 0.0
    %v621 = vmax.f32 %v589, 0.0
    %v622 = vmax.f32 %v590, 0.0
    %v623 = vmax.f32 %v591, 0.0
    %v624 = vmax.f32 %v592, 0.0
    %v625 = vmax.f32 %v593, 0.0
    %v626 = vmax.f32 %v594, 0.0
    %v627 = vmax.f32 %v595, 0.0
    %v628 = vmax.f32 %v596, 0.0
    %v629 = vmax.f32 %v597, 0.0
    %v630 = vmax.f32 %v598, 0.0
    %v631 = vld [vmem:[#allocation8] sm:$0xff]
    %v632 = vld [vmem:[#allocation8 + $0x8] sm:$0xff]
    %v633 = vld [vmem:[#allocation8 + $0x10] sm:$0xff]
    %v634 = vld [vmem:[#allocation8 + $0x18] sm:$0xff]
    %v635 = vld [vmem:[#allocation8 + $0x20] sm:$0xff]
    %v636 = vld [vmem:[#allocation8 + $0x28] sm:$0xff]
    %v637 = vld [vmem:[#allocation8 + $0x30] sm:$0xff]
    %v638 = vld [vmem:[#allocation8 + $0x38] sm:$0xff]
    %v639 = vld [vmem:[#allocation8 + $0x40] sm:$0xff]
    %v640 = vld [vmem:[#allocation8 + $0x48] sm:$0xff]
    %v641 = vld [vmem:[#allocation8 + $0x50] sm:$0xff]
    %v642 = vld [vmem:[#allocation8 + $0x58] sm:$0xff]
    %v643 = vld [vmem:[#allocation8 + $0x60] sm:$0xff]
    %v644 = vld [vmem:[#allocation8 + $0x68] sm:$0xff]
    %v645 = vld [vmem:[#allocation8 + $0x70] sm:$0xff]
    %v646 = vld [vmem:[#allocation8 + $0x78] sm:$0xff]
    %v647 = vld [vmem:[%s6] sm:$0x1]
    %v649 = vlaneseq
    %v650 = vshrl.u32 %v649, 7
    %v651 = vsub.s32 0, %v650
    %v652 = vrot.slane %v647, %v651
    %654 = vmatprep.subr.mxu0 0.0
    %655 = vmatpush1.msra.mxu0 %v631
    %656 = vmatprep.subr.mxu0 0.0
    %657 = vmatpush1.msra.mxu0 %v632
    %658 = vmatprep.subr.mxu0 0.0
    %659 = vmatpush1.msra.mxu0 %v633
    %660 = vmatprep.subr.mxu0 0.0
    %661 = vmatpush1.msra.mxu0 %v634
    %662 = vmatprep.subr.mxu0 0.0
    %663 = vmatpush1.msra.mxu0 %v635
    %664 = vmatprep.subr.mxu0 0.0
    %665 = vmatpush1.msra.mxu0 %v636
    %666 = vmatprep.subr.mxu0 0.0
    %667 = vmatpush1.msra.mxu0 %v637
    %668 = vmatprep.subr.mxu0 0.0
    %669 = vmatpush1.msra.mxu0 %v638
    %670 = vmatprep.subr.mxu0 0.0
    %671 = vmatpush1.msra.mxu0 %v639
    %672 = vmatprep.subr.mxu0 0.0
    %673 = vmatpush1.msra.mxu0 %v640
    %674 = vmatprep.subr.mxu0 0.0
    %675 = vmatpush1.msra.mxu0 %v641
    %676 = vmatprep.subr.mxu0 0.0
    %677 = vmatpush1.msra.mxu0 %v642
    %678 = vmatprep.subr.mxu0 0.0
    %679 = vmatpush1.msra.mxu0 %v643
    %680 = vmatprep.subr.mxu0 0.0
    %681 = vmatpush1.msra.mxu0 %v644
    %682 = vmatprep.subr.mxu0 0.0
    %683 = vmatpush1.msra.mxu0 %v645
    %684 = vmatprep.subr.mxu0 0.0
    %685 = vmatpush1.msra.mxu0 %v646
    %686 = vmatprep.subr.mxu0 0.0
    %687 = vmatpush1.msra.mxu0 0.0
    %688 = vmatprep.subr.mxu0 0.0
    %689 = vmatpush1.msra.mxu0 0.0
    %690 = vmatprep.subr.mxu0 0.0
    %691 = vmatpush1.msra.mxu0 0.0
    %692 = vmatprep.subr.mxu0 0.0
    %693 = vmatpush1.msra.mxu0 0.0
    %694 = vmatprep.subr.mxu0 0.0
    %695 = vmatpush1.msra.mxu0 0.0
    %696 = vmatprep.subr.mxu0 0.0
    %697 = vmatpush1.msra.mxu0 0.0
    %698 = vmatprep.subr.mxu0 0.0
    %699 = vmatpush1.msra.mxu0 0.0
    %700 = vmatprep.subr.mxu0 0.0
    %701 = vmatpush1.msra.mxu0 0.0
    %702 = vmatprep.subr.mxu0 0.0
    %703 = vmatpush1.msra.mxu0 0.0
    %704 = vmatprep.subr.mxu0 0.0
    %705 = vmatpush1.msra.mxu0 0.0
    %706 = vmatprep.subr.mxu0 0.0
    %707 = vmatpush1.msra.mxu0 0.0
    %708 = vmatprep.subr.mxu0 0.0
    %709 = vmatpush1.msra.mxu0 0.0
    %710 = vmatprep.subr.mxu0 0.0
    %711 = vmatpush1.msra.mxu0 0.0
    %712 = vmatprep.subr.mxu0 0.0
    %713 = vmatpush1.msra.mxu0 0.0
    %714 = vmatprep.subr.mxu0 0.0
    %715 = vmatpush1.msra.mxu0 0.0
    %716 = vmatprep.subr.mxu0 0.0
    %717 = vmatpush1.msra.mxu0 0.0
    %718 = vmatprep.mubr.f32.mxu0 0.0
    %719 = vmatmul.mubr.f32.gmra.mrb[0].mxu0 %v599
    %v720 = vpop.f32.mrb[0].mxu0
    %v721 = vadd.f32 %v652, %v720
    %v722 = vpop.f32.mrb[0].mxu0
    %723 = vmatprep.mubr.f32.mxu0 0.0
    %724 = vmatmul.mubr.f32.gmra.mrb[0].mxu0 %v601
    %v725 = vpop.f32.mrb[0].mxu0
    %v726 = vadd.f32 %v652, %v725
    %v727 = vpop.f32.mrb[0].mxu0
    %728 = vmatprep.mubr.f32.mxu0 0.0
    %729 = vmatmul.mubr.f32.gmra.mrb[0].mxu0 %v603
    %v730 = vpop.f32.mrb[0].mxu0
    %v731 = vadd.f32 %v652, %v730
    %v732 = vpop.f32.mrb[0].mxu0
    %733 = vmatprep.mubr.f32.mxu0 0.0
    %734 = vmatmul.mubr.f32.gmra.mrb[0].mxu0 %v605
    %v735 = vpop.f32.mrb[0].mxu0
    %v736 = vadd.f32 %v652, %v735
    %v737 = vpop.f32.mrb[0].mxu0
    %738 = vmatprep.mubr.f32.mxu0 0.0
    %739 = vmatmul.mubr.f32.gmra.mrb[0].mxu0 %v607
    %v740 = vpop.f32.mrb[0].mxu0
    %v741 = vadd.f32 %v652, %v740
    %v742 = vpop.f32.mrb[0].mxu0
    %743 = vmatprep.mubr.f32.mxu0 0.0
    %744 = vmatmul.mubr.f32.gmra.mrb[0].mxu0 %v609
    %v745 = vpop.f32.mrb[0].mxu0
    %v746 = vadd.f32 %v652, %v745
    %v747 = vpop.f32.mrb[0].mxu0
    %748 = vmatprep.mubr.f32.mxu0 0.0
    %749 = vmatmul.mubr.f32.gmra.mrb[0].mxu0 %v611
    %v750 = vpop.f32.mrb[0].mxu0
    %v751 = vadd.f32 %v652, %v750
    %v752 = vpop.f32.mrb[0].mxu0
    %753 = vmatprep.mubr.f32.mxu0 0.0
    %754 = vmatmul.mubr.f32.gmra.mrb[0].mxu0 %v613
    %v755 = vpop.f32.mrb[0].mxu0
    %v756 = vadd.f32 %v652, %v755
    %v757 = vpop.f32.mrb[0].mxu0
    %758 = vmatprep.mubr.f32.mxu0 0.0
    %759 = vmatmul.mubr.f32.gmra.mrb[0].mxu0 %v615
    %v760 = vpop.f32.mrb[0].mxu0
    %v761 = vadd.f32 %v652, %v760
    %v762 = vpop.f32.mrb[0].mxu0
    %763 = vmatprep.mubr.f32.mxu0 0.0
    %764 = vmatmul.mubr.f32.gmra.mrb[0].mxu0 %v617
    %v765 = vpop.f32.mrb[0].mxu0
    %v766 = vadd.f32 %v652, %v765
    %v767 = vpop.f32.mrb[0].mxu0
    %768 = vmatprep.mubr.f32.mxu0 0.0
    %769 = vmatmul.mubr.f32.gmra.mrb[0].mxu0 %v619
    %v770 = vpop.f32.mrb[0].mxu0
    %v771 = vadd.f32 %v652, %v770
    %v772 = vpop.f32.mrb[0].mxu0
    %773 = vmatprep.mubr.f32.mxu0 0.0
    %774 = vmatmul.mubr.f32.gmra.mrb[0].mxu0 %v621
    %v775 = vpop.f32.mrb[0].mxu0
    %v776 = vadd.f32 %v652, %v775
    %v777 = vpop.f32.mrb[0].mxu0
    %778 = vmatprep.mubr.f32.mxu0 0.0
    %779 = vmatmul.mubr.f32.gmra.mrb[0].mxu0 %v623
    %v780 = vpop.f32.mrb[0].mxu0
    %v781 = vadd.f32 %v652, %v780
    %v782 = vpop.f32.mrb[0].mxu0
    %783 = vmatprep.mubr.f32.mxu0 0.0
    %784 = vmatmul.mubr.f32.gmra.mrb[0].mxu0 %v625
    %v785 = vpop.f32.mrb[0].mxu0
    %v786 = vadd.f32 %v652, %v785
    %v787 = vpop.f32.mrb[0].mxu0
    %788 = vmatprep.mubr.f32.mxu0 0.0
    %789 = vmatmul.mubr.f32.gmra.mrb[0].mxu0 %v627
    %v790 = vpop.f32.mrb[0].mxu0
    %v791 = vadd.f32 %v652, %v790
    %v792 = vpop.f32.mrb[0].mxu0
    %793 = vmatprep.mubr.f32.mxu0 0.0
    %794 = vmatmul.mubr.f32.gmra.mrb[0].mxu0 %v629
    %v795 = vpop.f32.mrb[0].mxu0
    %v796 = vadd.f32 %v652, %v795
    %v797 = vpop.f32.mrb[0].mxu0
    %798 = vdwg.mxu0
    %v799 = vmax.f32 %v721, 0.0
    %v800 = vmax.f32 %v726, 0.0
    %v801 = vmax.f32 %v731, 0.0
    %v802 = vmax.f32 %v736, 0.0
    %v803 = vmax.f32 %v741, 0.0
    %v804 = vmax.f32 %v746, 0.0
    %v805 = vmax.f32 %v751, 0.0
    %v806 = vmax.f32 %v756, 0.0
    %v807 = vmax.f32 %v761, 0.0
    %v808 = vmax.f32 %v766, 0.0
    %v809 = vmax.f32 %v771, 0.0
    %v810 = vmax.f32 %v776, 0.0
    %v811 = vmax.f32 %v781, 0.0
    %v812 = vmax.f32 %v786, 0.0
    %v813 = vmax.f32 %v791, 0.0
    %v814 = vmax.f32 %v796, 0.0
    %v815 = vld [vmem:[%s7] sm:$0x1]
    %v817 = vlaneseq
    %v818 = vshrl.u32 %v817, 7
    %v819 = vsub.s32 0, %v818
    %v820 = vrot.slane %v815, %v819
    %v822 = vmul.f32 %v799, %v820
    %v823 = vmul.f32 %v800, %v820
    %v824 = vmul.f32 %v801, %v820
    %v825 = vmul.f32 %v802, %v820
    %v826 = vmul.f32 %v803, %v820
    %v827 = vmul.f32 %v804, %v820
    %v828 = vmul.f32 %v805, %v820
    %v829 = vmul.f32 %v806, %v820
    %v830 = vmul.f32 %v807, %v820
    %v831 = vmul.f32 %v808, %v820
    %v832 = vmul.f32 %v809, %v820
    %v833 = vmul.f32 %v810, %v820
    %v834 = vmul.f32 %v811, %v820
    %v835 = vmul.f32 %v812, %v820
    %v836 = vmul.f32 %v813, %v820
    %v837 = vmul.f32 %v814, %v820
    %838 = vadd.xlane.f32.xlu0 %v822
    %v839 = vpop.xlane.xlu0 %838
    %840 = vadd.xlane.f32.xlu0 %v823
    %v841 = vpop.xlane.xlu0 %840
    %842 = vadd.xlane.f32.xlu0 %v824
    %v843 = vpop.xlane.xlu0 %842
    %844 = vadd.xlane.f32.xlu0 %v825
    %v845 = vpop.xlane.xlu0 %844
    %846 = vadd.xlane.f32.xlu0 %v826
    %v847 = vpop.xlane.xlu0 %846
    %848 = vadd.xlane.f32.xlu0 %v827
    %v849 = vpop.xlane.xlu0 %848
    %850 = vadd.xlane.f32.xlu0 %v828
    %v851 = vpop.xlane.xlu0 %850
    %852 = vadd.xlane.f32.xlu0 %v829
    %v853 = vpop.xlane.xlu0 %852
    %854 = vadd.xlane.f32.xlu0 %v830
    %v855 = vpop.xlane.xlu0 %854
    %856 = vadd.xlane.f32.xlu0 %v831
    %v857 = vpop.xlane.xlu0 %856
    %858 = vadd.xlane.f32.xlu0 %v832
    %v859 = vpop.xlane.xlu0 %858
    %860 = vadd.xlane.f32.xlu0 %v833
    %v861 = vpop.xlane.xlu0 %860
    %862 = vadd.xlane.f32.xlu0 %v834
    %v863 = vpop.xlane.xlu0 %862
    %864 = vadd.xlane.f32.xlu0 %v835
    %v865 = vpop.xlane.xlu0 %864
    %866 = vadd.xlane.f32.xlu0 %v836
    %v867 = vpop.xlane.xlu0 %866
    %868 = vadd.xlane.f32.xlu0 %v837
    %v869 = vpop.xlane.xlu0 %868
    %s870 = sld [smem:[#allocation9]]
    %v871 = vstv %s870
    %v872 = vadd.f32 %v839, %v871
    %v873 = vadd.f32 %v841, %v871
    %v874 = vadd.f32 %v843, %v871
    %v875 = vadd.f32 %v845, %v871
    %v876 = vadd.f32 %v847, %v871
    %v877 = vadd.f32 %v849, %v871
    %v878 = vadd.f32 %v851, %v871
    %v879 = vadd.f32 %v853, %v871
    %v880 = vadd.f32 %v855, %v871
    %v881 = vadd.f32 %v857, %v871
    %v882 = vadd.f32 %v859, %v871
    %v883 = vadd.f32 %v861, %v871
    %v884 = vadd.f32 %v863, %v871
    %v885 = vadd.f32 %v865, %v871
    %v886 = vadd.f32 %v867, %v871
    %v887 = vadd.f32 %v869, %v871
    %s888 = scalar_lea.vmem [#allocation8], 128
    %v889 = vld [vmem:[%s888] sm:$0xff]
    %v890 = vld [vmem:[%s888 + $0x8] sm:$0xff]
    %v891 = vld [vmem:[%s888 + $0x10] sm:$0xff]
    %v892 = vld [vmem:[%s888 + $0x18] sm:$0xff]
    %v893 = vld [vmem:[%s888 + $0x20] sm:$0xff]
    %v894 = vld [vmem:[%s888 + $0x28] sm:$0xff]
    %v895 = vld [vmem:[%s888 + $0x30] sm:$0xff]
    %v896 = vld [vmem:[%s888 + $0x38] sm:$0xff]
    %v897 = vld [vmem:[%s888 + $0x40] sm:$0xff]
    %v898 = vld [vmem:[%s888 + $0x48] sm:$0xff]
    %v899 = vld [vmem:[%s888 + $0x50] sm:$0xff]
    %v900 = vld [vmem:[%s888 + $0x58] sm:$0xff]
    %v901 = vld [vmem:[%s888 + $0x60] sm:$0xff]
    %v902 = vld [vmem:[%s888 + $0x68] sm:$0xff]
    %v903 = vld [vmem:[%s888 + $0x70] sm:$0xff]
    %v904 = vld [vmem:[%s888 + $0x78] sm:$0xff]
    %s905 = scalar_lea.vmem %s6, 1
    %v906 = vld [vmem:[%s905] sm:$0x1]
    %v908 = vlaneseq
    %v909 = vshrl.u32 %v908, 7
    %v910 = vsub.s32 0, %v909
    %v911 = vrot.slane %v906, %v910
    %913 = vmatprep.subr.mxu0 0.0
    %914 = vmatpush1.msra.mxu0 %v889
    %915 = vmatprep.subr.mxu0 0.0
    %916 = vmatpush1.msra.mxu0 %v890
    %917 = vmatprep.subr.mxu0 0.0
    %918 = vmatpush1.msra.mxu0 %v891
    %919 = vmatprep.subr.mxu0 0.0
    %920 = vmatpush1.msra.mxu0 %v892
    %921 = vmatprep.subr.mxu0 0.0
    %922 = vmatpush1.msra.mxu0 %v893
    %923 = vmatprep.subr.mxu0 0.0
    %924 = vmatpush1.msra.mxu0 %v894
    %925 = vmatprep.subr.mxu0 0.0
    %926 = vmatpush1.msra.mxu0 %v895
    %927 = vmatprep.subr.mxu0 0.0
    %928 = vmatpush1.msra.mxu0 %v896
    %929 = vmatprep.subr.mxu0 0.0
    %930 = vmatpush1.msra.mxu0 %v897
    %931 = vmatprep.subr.mxu0 0.0
    %932 = vmatpush1.msra.mxu0 %v898
    %933 = vmatprep.subr.mxu0 0.0
    %934 = vmatpush1.msra.mxu0 %v899
    %935 = vmatprep.subr.mxu0 0.0
    %936 = vmatpush1.msra.mxu0 %v900
    %937 = vmatprep.subr.mxu0 0.0
    %938 = vmatpush1.msra.mxu0 %v901
    %939 = vmatprep.subr.mxu0 0.0
    %940 = vmatpush1.msra.mxu0 %v902
    %941 = vmatprep.subr.mxu0 0.0
    %942 = vmatpush1.msra.mxu0 %v903
    %943 = vmatprep.subr.mxu0 0.0
    %944 = vmatpush1.msra.mxu0 %v904
    %945 = vmatprep.subr.mxu0 0.0
    %946 = vmatpush1.msra.mxu0 0.0
    %947 = vmatprep.subr.mxu0 0.0
    %948 = vmatpush1.msra.mxu0 0.0
    %949 = vmatprep.subr.mxu0 0.0
    %950 = vmatpush1.msra.mxu0 0.0
    %951 = vmatprep.subr.mxu0 0.0
    %952 = vmatpush1.msra.mxu0 0.0
    %953 = vmatprep.subr.mxu0 0.0
    %954 = vmatpush1.msra.mxu0 0.0
    %955 = vmatprep.subr.mxu0 0.0
    %956 = vmatpush1.msra.mxu0 0.0
    %957 = vmatprep.subr.mxu0 0.0
    %958 = vmatpush1.msra.mxu0 0.0
    %959 = vmatprep.subr.mxu0 0.0
    %960 = vmatpush1.msra.mxu0 0.0
    %961 = vmatprep.subr.mxu0 0.0
    %962 = vmatpush1.msra.mxu0 0.0
    %963 = vmatprep.subr.mxu0 0.0
    %964 = vmatpush1.msra.mxu0 0.0
    %965 = vmatprep.subr.mxu0 0.0
    %966 = vmatpush1.msra.mxu0 0.0
    %967 = vmatprep.subr.mxu0 0.0
    %968 = vmatpush1.msra.mxu0 0.0
    %969 = vmatprep.subr.mxu0 0.0
    %970 = vmatpush1.msra.mxu0 0.0
    %971 = vmatprep.subr.mxu0 0.0
    %972 = vmatpush1.msra.mxu0 0.0
    %973 = vmatprep.subr.mxu0 0.0
    %974 = vmatpush1.msra.mxu0 0.0
    %975 = vmatprep.subr.mxu0 0.0
    %976 = vmatpush1.msra.mxu0 0.0
    %977 = vmatprep.mubr.f32.mxu0 0.0
    %978 = vmatmul.mubr.f32.gmra.mrb[0].mxu0 %v600
    %v979 = vpop.f32.mrb[0].mxu0
    %v980 = vadd.f32 %v911, %v979
    %v981 = vpop.f32.mrb[0].mxu0
    %982 = vmatprep.mubr.f32.mxu0 0.0
    %983 = vmatmul.mubr.f32.gmra.mrb[0].mxu0 %v602
    %v984 = vpop.f32.mrb[0].mxu0
    %v985 = vadd.f32 %v911, %v984
    %v986 = vpop.f32.mrb[0].mxu0
    %987 = vmatprep.mubr.f32.mxu0 0.0
    %988 = vmatmul.mubr.f32.gmra.mrb[0].mxu0 %v604
    %v989 = vpop.f32.mrb[0].mxu0
    %v990 = vadd.f32 %v911, %v989
    %v991 = vpop.f32.mrb[0].mxu0
    %992 = vmatprep.mubr.f32.mxu0 0.0
    %993 = vmatmul.mubr.f32.gmra.mrb[0].mxu0 %v606
    %v994 = vpop.f32.mrb[0].mxu0
    %v995 = vadd.f32 %v911, %v994
    %v996 = vpop.f32.mrb[0].mxu0
    %997 = vmatprep.mubr.f32.mxu0 0.0
    %998 = vmatmul.mubr.f32.gmra.mrb[0].mxu0 %v608
    %v999 = vpop.f32.mrb[0].mxu0
    %v1000 = vadd.f32 %v911, %v999
    %v1001 = vpop.f32.mrb[0].mxu0
    %1002 = vmatprep.mubr.f32.mxu0 0.0
    %1003 = vmatmul.mubr.f32.gmra.mrb[0].mxu0 %v610
    %v1004 = vpop.f32.mrb[0].mxu0
    %v1005 = vadd.f32 %v911, %v1004
    %v1006 = vpop.f32.mrb[0].mxu0
    %1007 = vmatprep.mubr.f32.mxu0 0.0
    %1008 = vmatmul.mubr.f32.gmra.mrb[0].mxu0 %v612
    %v1009 = vpop.f32.mrb[0].mxu0
    %v1010 = vadd.f32 %v911, %v1009
    %v1011 = vpop.f32.mrb[0].mxu0
    %1012 = vmatprep.mubr.f32.mxu0 0.0
    %1013 = vmatmul.mubr.f32.gmra.mrb[0].mxu0 %v614
    %v1014 = vpop.f32.mrb[0].mxu0
    %v1015 = vadd.f32 %v911, %v1014
    %v1016 = vpop.f32.mrb[0].mxu0
    %1017 = vmatprep.mubr.f32.mxu0 0.0
    %1018 = vmatmul.mubr.f32.gmra.mrb[0].mxu0 %v616
    %v1019 = vpop.f32.mrb[0].mxu0
    %v1020 = vadd.f32 %v911, %v1019
    %v1021 = vpop.f32.mrb[0].mxu0
    %1022 = vmatprep.mubr.f32.mxu0 0.0
    %1023 = vmatmul.mubr.f32.gmra.mrb[0].mxu0 %v618
    %v1024 = vpop.f32.mrb[0].mxu0
    %v1025 = vadd.f32 %v911, %v1024
    %v1026 = vpop.f32.mrb[0].mxu0
    %1027 = vmatprep.mubr.f32.mxu0 0.0
    %1028 = vmatmul.mubr.f32.gmra.mrb[0].mxu0 %v620
    %v1029 = vpop.f32.mrb[0].mxu0
    %v1030 = vadd.f32 %v911, %v1029
    %v1031 = vpop.f32.mrb[0].mxu0
    %1032 = vmatprep.mubr.f32.mxu0 0.0
    %1033 = vmatmul.mubr.f32.gmra.mrb[0].mxu0 %v622
    %v1034 = vpop.f32.mrb[0].mxu0
    %v1035 = vadd.f32 %v911, %v1034
    %v1036 = vpop.f32.mrb[0].mxu0
    %1037 = vmatprep.mubr.f32.mxu0 0.0
    %1038 = vmatmul.mubr.f32.gmra.mrb[0].mxu0 %v624
    %v1039 = vpop.f32.mrb[0].mxu0
    %v1040 = vadd.f32 %v911, %v1039
    %v1041 = vpop.f32.mrb[0].mxu0
    %1042 = vmatprep.mubr.f32.mxu0 0.0
    %1043 = vmatmul.mubr.f32.gmra.mrb[0].mxu0 %v626
    %v1044 = vpop.f32.mrb[0].mxu0
    %v1045 = vadd.f32 %v911, %v1044
    %v1046 = vpop.f32.mrb[0].mxu0
    %1047 = vmatprep.mubr.f32.mxu0 0.0
    %1048 = vmatmul.mubr.f32.gmra.mrb[0].mxu0 %v628
    %v1049 = vpop.f32.mrb[0].mxu0
    %v1050 = vadd.f32 %v911, %v1049
    %v1051 = vpop.f32.mrb[0].mxu0
    %1052 = vmatprep.mubr.f32.mxu0 0.0
    %1053 = vmatmul.mubr.f32.gmra.mrb[0].mxu0 %v630
    %v1054 = vpop.f32.mrb[0].mxu0
    %v1055 = vadd.f32 %v911, %v1054
    %v1056 = vpop.f32.mrb[0].mxu0
    %1057 = vdwg.mxu0
    %v1058 = vmax.f32 %v980, 0.0
    %v1059 = vmax.f32 %v985, 0.0
    %v1060 = vmax.f32 %v990, 0.0
    %v1061 = vmax.f32 %v995, 0.0
    %v1062 = vmax.f32 %v1000, 0.0
    %v1063 = vmax.f32 %v1005, 0.0
    %v1064 = vmax.f32 %v1010, 0.0
    %v1065 = vmax.f32 %v1015, 0.0
    %v1066 = vmax.f32 %v1020, 0.0
    %v1067 = vmax.f32 %v1025, 0.0
    %v1068 = vmax.f32 %v1030, 0.0
    %v1069 = vmax.f32 %v1035, 0.0
    %v1070 = vmax.f32 %v1040, 0.0
    %v1071 = vmax.f32 %v1045, 0.0
    %v1072 = vmax.f32 %v1050, 0.0
    %v1073 = vmax.f32 %v1055, 0.0
    %s1074 = scalar_lea.vmem %s7, 1
    %v1075 = vld [vmem:[%s1074] sm:$0x1]
    %v1077 = vlaneseq
    %v1078 = vshrl.u32 %v1077, 7
    %v1079 = vsub.s32 0, %v1078
    %v1080 = vrot.slane %v1075, %v1079
    %v1082 = vmul.f32 %v1058, %v1080
    %v1083 = vmul.f32 %v1059, %v1080
    %v1084 = vmul.f32 %v1060, %v1080
    %v1085 = vmul.f32 %v1061, %v1080
    %v1086 = vmul.f32 %v1062, %v1080
    %v1087 = vmul.f32 %v1063, %v1080
    %v1088 = vmul.f32 %v1064, %v1080
    %v1089 = vmul.f32 %v1065, %v1080
    %v1090 = vmul.f32 %v1066, %v1080
    %v1091 = vmul.f32 %v1067, %v1080
    %v1092 = vmul.f32 %v1068, %v1080
    %v1093 = vmul.f32 %v1069, %v1080
    %v1094 = vmul.f32 %v1070, %v1080
    %v1095 = vmul.f32 %v1071, %v1080
    %v1096 = vmul.f32 %v1072, %v1080
    %v1097 = vmul.f32 %v1073, %v1080
    %1098 = vadd.xlane.f32.xlu0 %v1082
    %v1099 = vpop.xlane.xlu0 %1098
    %1100 = vadd.xlane.f32.xlu0 %v1083
    %v1101 = vpop.xlane.xlu0 %1100
    %1102 = vadd.xlane.f32.xlu0 %v1084
    %v1103 = vpop.xlane.xlu0 %1102
    %1104 = vadd.xlane.f32.xlu0 %v1085
    %v1105 = vpop.xlane.xlu0 %1104
    %1106 = vadd.xlane.f32.xlu0 %v1086
    %v1107 = vpop.xlane.xlu0 %1106
    %1108 = vadd.xlane.f32.xlu0 %v1087
    %v1109 = vpop.xlane.xlu0 %1108
    %1110 = vadd.xlane.f32.xlu0 %v1088
    %v1111 = vpop.xlane.xlu0 %1110
    %1112 = vadd.xlane.f32.xlu0 %v1089
    %v1113 = vpop.xlane.xlu0 %1112
    %1114 = vadd.xlane.f32.xlu0 %v1090
    %v1115 = vpop.xlane.xlu0 %1114
    %1116 = vadd.xlane.f32.xlu0 %v1091
    %v1117 = vpop.xlane.xlu0 %1116
    %1118 = vadd.xlane.f32.xlu0 %v1092
    %v1119 = vpop.xlane.xlu0 %1118
    %1120 = vadd.xlane.f32.xlu0 %v1093
    %v1121 = vpop.xlane.xlu0 %1120
    %1122 = vadd.xlane.f32.xlu0 %v1094
    %v1123 = vpop.xlane.xlu0 %1122
    %1124 = vadd.xlane.f32.xlu0 %v1095
    %v1125 = vpop.xlane.xlu0 %1124
    %1126 = vadd.xlane.f32.xlu0 %v1096
    %v1127 = vpop.xlane.xlu0 %1126
    %1128 = vadd.xlane.f32.xlu0 %v1097
    %v1129 = vpop.xlane.xlu0 %1128
    %s1130 = sld [smem:[#allocation9 + $0x1]]
    %v1131 = vstv %s1130
    %v1132 = vadd.f32 %v1099, %v1131
    %v1133 = vadd.f32 %v1101, %v1131
    %v1134 = vadd.f32 %v1103, %v1131
    %v1135 = vadd.f32 %v1105, %v1131
    %v1136 = vadd.f32 %v1107, %v1131
    %v1137 = vadd.f32 %v1109, %v1131
    %v1138 = vadd.f32 %v1111, %v1131
    %v1139 = vadd.f32 %v1113, %v1131
    %v1140 = vadd.f32 %v1115, %v1131
    %v1141 = vadd.f32 %v1117, %v1131
    %v1142 = vadd.f32 %v1119, %v1131
    %v1143 = vadd.f32 %v1121, %v1131
    %v1144 = vadd.f32 %v1123, %v1131
    %v1145 = vadd.f32 %v1125, %v1131
    %v1146 = vadd.f32 %v1127, %v1131
    %v1147 = vadd.f32 %v1129, %v1131
    %v1164 = vlaneseq
    %v1165 = vand.u32 %v1164, 127
    %v1166 = vlaneseq
    %v1167 = vshrl.u32 %v1166, 7
    %v1168 = vsub.s32 %v1165, %v1167
    %v1169 = vrot.slane %v872, %v1168
    %v1170 = vadd.s32 %v1165, 4294967288
    %v1171 = vlaneseq
    %v1172 = vshrl.u32 %v1171, 7
    %v1173 = vsub.s32 %v1170, %v1172
    %v1174 = vrot.slane %v873, %v1173
    %vm1175 = vcmask 130112
    %v1176 = vsel %vm1175, %v1174, %v1169
    %v1177 = vadd.s32 %v1165, 4294967280
    %v1178 = vlaneseq
    %v1179 = vshrl.u32 %v1178, 7
    %v1180 = vsub.s32 %v1177, %v1179
    %v1181 = vrot.slane %v874, %v1180
    %vm1182 = vcmask 195712
    %v1183 = vsel %vm1182, %v1181, %v1176
    %v1184 = vadd.s32 %v1165, 4294967272
    %v1185 = vlaneseq
    %v1186 = vshrl.u32 %v1185, 7
    %v1187 = vsub.s32 %v1184, %v1186
    %v1188 = vrot.slane %v875, %v1187
    %vm1189 = vcmask 261312
    %v1190 = vsel %vm1189, %v1188, %v1183
    %v1191 = vadd.s32 %v1165, 4294967264
    %v1192 = vlaneseq
    %v1193 = vshrl.u32 %v1192, 7
    %v1194 = vsub.s32 %v1191, %v1193
    %v1195 = vrot.slane %v876, %v1194
    %vm1196 = vcmask 326912
    %v1197 = vsel %vm1196, %v1195, %v1190
    %v1198 = vadd.s32 %v1165, 4294967256
    %v1199 = vlaneseq
    %v1200 = vshrl.u32 %v1199, 7
    %v1201 = vsub.s32 %v1198, %v1200
    %v1202 = vrot.slane %v877, %v1201
    %vm1203 = vcmask 392512
    %v1204 = vsel %vm1203, %v1202, %v1197
    %v1205 = vadd.s32 %v1165, 4294967248
    %v1206 = vlaneseq
    %v1207 = vshrl.u32 %v1206, 7
    %v1208 = vsub.s32 %v1205, %v1207
    %v1209 = vrot.slane %v878, %v1208
    %vm1210 = vcmask 458112
    %v1211 = vsel %vm1210, %v1209, %v1204
    %v1212 = vadd.s32 %v1165, 4294967240
    %v1213 = vlaneseq
    %v1214 = vshrl.u32 %v1213, 7
    %v1215 = vsub.s32 %v1212, %v1214
    %v1216 = vrot.slane %v879, %v1215
    %vm1217 = vcmask 523712
    %v1218 = vsel %vm1217, %v1216, %v1211
    %v1219 = vadd.s32 %v1165, 4294967232
    %v1220 = vlaneseq
    %v1221 = vshrl.u32 %v1220, 7
    %v1222 = vsub.s32 %v1219, %v1221
    %v1223 = vrot.slane %v880, %v1222
    %vm1224 = vcmask 589312
    %v1225 = vsel %vm1224, %v1223, %v1218
    %v1226 = vadd.s32 %v1165, 4294967224
    %v1227 = vlaneseq
    %v1228 = vshrl.u32 %v1227, 7
    %v1229 = vsub.s32 %v1226, %v1228
    %v1230 = vrot.slane %v881, %v1229
    %vm1231 = vcmask 654912
    %v1232 = vsel %vm1231, %v1230, %v1225
    %v1233 = vadd.s32 %v1165, 4294967216
    %v1234 = vlaneseq
    %v1235 = vshrl.u32 %v1234, 7
    %v1236 = vsub.s32 %v1233, %v1235
    %v1237 = vrot.slane %v882, %v1236
    %vm1238 = vcmask 720512
    %v1239 = vsel %vm1238, %v1237, %v1232
    %v1240 = vadd.s32 %v1165, 4294967208
    %v1241 = vlaneseq
    %v1242 = vshrl.u32 %v1241, 7
    %v1243 = vsub.s32 %v1240, %v1242
    %v1244 = vrot.slane %v883, %v1243
    %vm1245 = vcmask 786112
    %v1246 = vsel %vm1245, %v1244, %v1239
    %v1247 = vadd.s32 %v1165, 4294967200
    %v1248 = vlaneseq
    %v1249 = vshrl.u32 %v1248, 7
    %v1250 = vsub.s32 %v1247, %v1249
    %v1251 = vrot.slane %v884, %v1250
    %vm1252 = vcmask 851712
    %v1253 = vsel %vm1252, %v1251, %v1246
    %v1254 = vadd.s32 %v1165, 4294967192
    %v1255 = vlaneseq
    %v1256 = vshrl.u32 %v1255, 7
    %v1257 = vsub.s32 %v1254, %v1256
    %v1258 = vrot.slane %v885, %v1257
    %vm1259 = vcmask 917312
    %v1260 = vsel %vm1259, %v1258, %v1253
    %v1261 = vadd.s32 %v1165, 4294967184
    %v1262 = vlaneseq
    %v1263 = vshrl.u32 %v1262, 7
    %v1264 = vsub.s32 %v1261, %v1263
    %v1265 = vrot.slane %v886, %v1264
    %vm1266 = vcmask 982912
    %v1267 = vsel %vm1266, %v1265, %v1260
    %v1268 = vadd.s32 %v1165, 4294967176
    %v1269 = vlaneseq
    %v1270 = vshrl.u32 %v1269, 7
    %v1271 = vsub.s32 %v1268, %v1270
    %v1272 = vrot.slane %v887, %v1271
    %vm1273 = vcmask 1048512
    %v1274 = vsel %vm1273, %v1272, %v1267
    %v1292 = vlaneseq
    %v1293 = vshrl.u32 %v1292, 7
    %v1294 = vsub.s32 %v1165, %v1293
    %v1295 = vrot.slane %v1132, %v1294
    %v1296 = vlaneseq
    %v1297 = vshrl.u32 %v1296, 7
    %v1298 = vsub.s32 %v1170, %v1297
    %v1299 = vrot.slane %v1133, %v1298
    %v1300 = vsel %vm1175, %v1299, %v1295
    %v1301 = vlaneseq
    %v1302 = vshrl.u32 %v1301, 7
    %v1303 = vsub.s32 %v1177, %v1302
    %v1304 = vrot.slane %v1134, %v1303
    %v1305 = vsel %vm1182, %v1304, %v1300
    %v1306 = vlaneseq
    %v1307 = vshrl.u32 %v1306, 7
    %v1308 = vsub.s32 %v1184, %v1307
    %v1309 = vrot.slane %v1135, %v1308
    %v1310 = vsel %vm1189, %v1309, %v1305
    %v1311 = vlaneseq
    %v1312 = vshrl.u32 %v1311, 7
    %v1313 = vsub.s32 %v1191, %v1312
    %v1314 = vrot.slane %v1136, %v1313
    %v1315 = vsel %vm1196, %v1314, %v1310
    %v1316 = vlaneseq
    %v1317 = vshrl.u32 %v1316, 7
    %v1318 = vsub.s32 %v1198, %v1317
    %v1319 = vrot.slane %v1137, %v1318
    %v1320 = vsel %vm1203, %v1319, %v1315
    %v1321 = vlaneseq
    %v1322 = vshrl.u32 %v1321, 7
    %v1323 = vsub.s32 %v1205, %v1322
    %v1324 = vrot.slane %v1138, %v1323
    %v1325 = vsel %vm1210, %v1324, %v1320
    %v1326 = vlaneseq
    %v1327 = vshrl.u32 %v1326, 7
    %v1328 = vsub.s32 %v1212, %v1327
    %v1329 = vrot.slane %v1139, %v1328
    %v1330 = vsel %vm1217, %v1329, %v1325
    %v1331 = vlaneseq
    %v1332 = vshrl.u32 %v1331, 7
    %v1333 = vsub.s32 %v1219, %v1332
    %v1334 = vrot.slane %v1140, %v1333
    %v1335 = vsel %vm1224, %v1334, %v1330
    %v1336 = vlaneseq
    %v1337 = vshrl.u32 %v1336, 7
    %v1338 = vsub.s32 %v1226, %v1337
    %v1339 = vrot.slane %v1141, %v1338
    %v1340 = vsel %vm1231, %v1339, %v1335
    %v1341 = vlaneseq
    %v1342 = vshrl.u32 %v1341, 7
    %v1343 = vsub.s32 %v1233, %v1342
    %v1344 = vrot.slane %v1142, %v1343
    %v1345 = vsel %vm1238, %v1344, %v1340
    %v1346 = vlaneseq
    %v1347 = vshrl.u32 %v1346, 7
    %v1348 = vsub.s32 %v1240, %v1347
    %v1349 = vrot.slane %v1143, %v1348
    %v1350 = vsel %vm1245, %v1349, %v1345
    %v1351 = vlaneseq
    %v1352 = vshrl.u32 %v1351, 7
    %v1353 = vsub.s32 %v1247, %v1352
    %v1354 = vrot.slane %v1144, %v1353
    %v1355 = vsel %vm1252, %v1354, %v1350
    %v1356 = vlaneseq
    %v1357 = vshrl.u32 %v1356, 7
    %v1358 = vsub.s32 %v1254, %v1357
    %v1359 = vrot.slane %v1145, %v1358
    %v1360 = vsel %vm1259, %v1359, %v1355
    %v1361 = vlaneseq
    %v1362 = vshrl.u32 %v1361, 7
    %v1363 = vsub.s32 %v1261, %v1362
    %v1364 = vrot.slane %v1146, %v1363
    %v1365 = vsel %vm1266, %v1364, %v1360
    %v1366 = vlaneseq
    %v1367 = vshrl.u32 %v1366, 7
    %v1368 = vsub.s32 %v1268, %v1367
    %v1369 = vrot.slane %v1147, %v1368
    %v1370 = vsel %vm1273, %v1369, %v1365
    %vm1372 = vcmask 1040384
    %v1373 = vsel %vm1372, %v1274, %v1370
    %1374 = vst [vmem:[#allocation10] sm:$0x3] %v1373
    // Predicated region
    $region54: #{tpu_custom_call.1} parent=1 // pred_check
      _
    $region55: #{tpu_custom_call.1} parent=1 // pred_check_branch
      %1376 = sbr.rel (0) target = $region57
    $region56: #{tpu_custom_call.1} parent=1 // pred_region
      %s1378 = ssub.s32 32, 32
      %1379 = vsyncadd [#allocation4], %s1378
      %s1381 = sshll.u32 [#allocation10], 4
      %s1382 = int_to_ptr.vmem [resolvable:$true] %s1381
      %1384 = dma.vmem_to_hbm [thread:$0]  %s1382, 32, %s9, [#allocation4]
    $region57: #{tpu_custom_call.1} parent=1 // pred_fallthru
      _
    // Predicated region
    $region58: #{tpu_custom_call.1} parent=1 // pred_check
      _
    $region59: #{tpu_custom_call.1} parent=1 // pred_check_branch
      %1386 = sbr.rel (0) target = $region61
    $region60: #{tpu_custom_call.1} parent=1 // pred_region
      %1387 = dma.done [#allocation4], 32
    $region61: #{tpu_custom_call.1} parent=1 // pred_fallthru
      _
    %1388 = vsyncpa [#allocation3], 1
    %1389 = vsyncpa [#allocation7], 1
    %1390 = vsyncpa [#allocation4], 1
    %1391 = vsyncpa [#allocation5], 1

</llo_original>
